<compile_context>
chip_gen: v6e
topology: v6e:2x2x1
jax: 0.10.0
libtpu: 0.0.40
codegen_flags: <defaults>
</compile_context>

<pallas_src>
import jax
import jax.numpy as jnp
from jax import lax
from jax.experimental import pallas as pl
from jax.experimental.pallas import tpu as pltpu

NUM_GROUPS = 8
EPS = 1e-5


def _make_kernel(H, W):
    HW = H * W
    # Lane-aligned interior offset (>= W+1 so every tap slice stays in-bounds;
    # rounded to 128 so the interior stores are lane-aligned).
    P = ((W + 1 + 127) // 128) * 128

    def kernel(x_ref, w1_ref, b1_ref, gmask_ref, gamma_ref, beta_ref,
               w2_ref, b2_ref, mask_ref, out_ref,
               xbuf_ref, patch1_ref, hbuf_ref, patch2_ref):
        # x_ref:    (Cin, HW) f32          w1_ref: (Ch, 9*Cin) bf16
        # b1/gamma/beta: (Ch, 1) f32       gmask_ref: (Ch, Ch) f32 (1/(HW*Cg) folded)
        # w2_ref:   (Cout, 9*Ch) bf16      b2_ref: (Cout, 1) f32
        # mask_ref: (3, HW) f32 (column-wrap masks for dj = 0, 1, 2)
        # out_ref:  (Cout, HW) f32 (lane-dense)
        Cin = x_ref.shape[0]
        Ch = gamma_ref.shape[0]

        # ---- stage the sample into the flat zero-halo shift buffer ----
        # (re-zeroed every step: halo stays correct under "parallel" sharding)
        xbuf_ref[...] = jnp.zeros_like(xbuf_ref)
        xbuf_ref[:, P:P + HW] = x_ref[...]

        # ---- im2col for conv1: nine masked lane-shifted slabs -> (9*Cin, HW) ----
        for di in range(3):
            for dj in range(3):
                t = di * 3 + dj
                start = P + (di - 1) * W + (dj - 1)
                slab = xbuf_ref[:, start:start + HW]
                if dj != 1:                                  # kill column wrap
                    slab = slab * mask_ref[dj:dj + 1, :]
                patch1_ref[t * Cin:(t + 1) * Cin, :] = slab.astype(jnp.bfloat16)

        # ---- conv1: single MXU matmul, lane-dense (Ch, HW), f32 accumulation ----
        h = jnp.dot(w1_ref[...], patch1_ref[...],
                    preferred_element_type=jnp.float32) + b1_ref[...]

        # ---- GroupNorm(NUM_GROUPS, Ch): stats in f32, hoisted group matrix ----
        s = jnp.sum(h, axis=1, keepdims=True)                # (Ch, 1) sums
        sq = jnp.sum(h * h, axis=1, keepdims=True)           # (Ch, 1) sum of squares
        mean_c = jnp.dot(gmask_ref[...], s, preferred_element_type=jnp.float32)
        ex2_c = jnp.dot(gmask_ref[...], sq, preferred_element_type=jnp.float32)
        var_c = jnp.maximum(ex2_c - mean_c * mean_c, 0.0)    # clamp: no NaN in rsqrt
        inv_c = lax.rsqrt(var_c + EPS)
        h = (h - mean_c) * (inv_c * gamma_ref[...]) + beta_ref[...]

        # ---- ReLU ----
        h = jnp.maximum(h, 0.0)

        # ---- im2col for conv2 via the hidden shift buffer (no HBM round trip) ----
        hbuf_ref[...] = jnp.zeros_like(hbuf_ref)
        hbuf_ref[:, P:P + HW] = h
        for di in range(3):
            for dj in range(3):
                t = di * 3 + dj
                start = P + (di - 1) * W + (dj - 1)
                slab = hbuf_ref[:, start:start + HW]
                if dj != 1:
                    slab = slab * mask_ref[dj:dj + 1, :]
                patch2_ref[t * Ch:(t + 1) * Ch, :] = slab.astype(jnp.bfloat16)

        # ---- conv2: single MXU matmul -> lane-dense (Cout, HW) output ----
        out = jnp.dot(w2_ref[...], patch2_ref[...],
                      preferred_element_type=jnp.float32) + b2_ref[...]
        out_ref[...] = out.astype(out_ref.dtype)

    return kernel, P


def _run_fused(x_flat, w1r, b1c, gmask, gammac, betac, w2r, b2c, mask, H, W):
    N, Cin, HW = x_flat.shape
    Ch = w1r.shape[0]
    Cout = w2r.shape[0]
    kernel, P = _make_kernel(H, W)
    bufw = HW + 2 * P
    return pl.pallas_call(
        kernel,
        out_shape=jax.ShapeDtypeStruct((N, Cout, HW), jnp.float32),
        grid_spec=pltpu.PrefetchScalarGridSpec(
            num_scalar_prefetch=0,
            grid=(N,),
            in_specs=[
                pl.BlockSpec((None, Cin, HW), lambda n: (n, 0, 0)),
                pl.BlockSpec((Ch, 9 * Cin), lambda n: (0, 0)),
                pl.BlockSpec((Ch, 1), lambda n: (0, 0)),
                pl.BlockSpec((Ch, Ch), lambda n: (0, 0)),
                pl.BlockSpec((Ch, 1), lambda n: (0, 0)),
                pl.BlockSpec((Ch, 1), lambda n: (0, 0)),
                pl.BlockSpec((Cout, 9 * Ch), lambda n: (0, 0)),
                pl.BlockSpec((Cout, 1), lambda n: (0, 0)),
                pl.BlockSpec((3, HW), lambda n: (0, 0)),
            ],
            out_specs=pl.BlockSpec((None, Cout, HW), lambda n: (n, 0, 0)),
            scratch_shapes=[
                pltpu.VMEM((Cin, bufw), jnp.float32),       # flat padded input
                pltpu.VMEM((9 * Cin, HW), jnp.bfloat16),    # im2col conv1
                pltpu.VMEM((Ch, bufw), jnp.float32),        # flat padded hidden
                pltpu.VMEM((9 * Ch, HW), jnp.bfloat16),     # im2col conv2
            ],
        ),
        compiler_params=pltpu.CompilerParams(
            dimension_semantics=("parallel",)),   # v7x: shard batch over 2 TCs
    )(x_flat, w1r, b1c, gmask, gammac, betac, w2r, b2c, mask)


@jax.jit
def unet_output_block(x_nchw, params):
    """Forward pass matching the PyTorch module.  x_nchw: (N, 2*hidden, H, W)."""
    w1, b1, gamma, beta, w2, b2 = params            # conv weights in OIHW (PyTorch)
    N, Cin, H, W = x_nchw.shape
    Ch = w1.shape[0]
    Cout = w2.shape[0]
    Cg = Ch // NUM_GROUPS
    HW = H * W

    x_flat = x_nchw.reshape(N, Cin, HW)             # free reshape (no transpose!)

    # Parameter prep (tiny, folded once by XLA): OIHW -> (O, KH*KW*I) flat taps,
    # bf16 for the MXU; biases/affine as lane-broadcastable columns.
    w1r = jnp.transpose(w1, (0, 2, 3, 1)).reshape(Ch, 9 * Cin).astype(jnp.bfloat16)
    w2r = jnp.transpose(w2, (0, 2, 3, 1)).reshape(Cout, 9 * Ch).astype(jnp.bfloat16)
    b1c = b1.reshape(Ch, 1).astype(jnp.float32)
    gammac = gamma.reshape(Ch, 1).astype(jnp.float32)
    betac = beta.reshape(Ch, 1).astype(jnp.float32)
    b2c = b2.reshape(Cout, 1).astype(jnp.float32)

    # Hoisted group-averaging matrix: group_mean_col = gmask @ channel_sum_col.
    gidx = jnp.arange(Ch) // Cg
    gmask = (gidx[:, None] == gidx[None, :]).astype(jnp.float32) / float(HW * Cg)

    # Hoisted column-wrap masks for taps dj = 0 / 1 / 2 (flattened H*W lanes).
    col = jnp.arange(HW, dtype=jnp.int32) % W
    mask = jnp.stack([(col > 0).astype(jnp.float32),
                      jnp.ones((HW,), jnp.float32),
                      (col < W - 1).astype(jnp.float32)], axis=0)   # (3, HW)

    out_flat = _run_fused(x_flat, w1r, b1c, gmask, gammac, betac, w2r, b2c,
                          mask, H, W)
    return out_flat.reshape(N, Cout, H, W)          # free reshape to NCHW


def reference(x_nchw, params):
    """Plain-JAX f32 reference (XLA convs) for correctness checking."""
    w1, b1, gamma, beta, w2, b2 = params
    dn = ("NCHW", "OIHW", "NCHW")
    y = lax.conv_general_dilated(x_nchw, w1, (1, 1), "SAME",
                                 dimension_numbers=dn,
                                 precision=lax.Precision.HIGHEST)
    y = y + b1.reshape(1, -1, 1, 1)
    N, C, H, W = y.shape
    yg = y.reshape(N, NUM_GROUPS, C // NUM_GROUPS, H, W)
    mean = yg.mean(axis=(2, 3, 4), keepdims=True)
    var = yg.var(axis=(2, 3, 4), keepdims=True)
    y = ((yg - mean) / jnp.sqrt(var + EPS)).reshape(N, C, H, W)
    y = y * gamma.reshape(1, -1, 1, 1) + beta.reshape(1, -1, 1, 1)
    y = jnp.maximum(y, 0.0)
    y = lax.conv_general_dilated(y, w2, (1, 1), "SAME",
                                 dimension_numbers=dn,
                                 precision=lax.Precision.HIGHEST)
    return y + b2.reshape(1, -1, 1, 1)


if __name__ == "__main__":
    hidden_channels = 16   # divisible by num_groups=8
    in_channels = 4
    N, H, W = 2, 16, 16
    Cin1 = 2 * hidden_channels

    key = jax.random.PRNGKey(0)
    ks = jax.random.split(key, 7)
    # Deterministic synthetic parameters, stored in PyTorch OIHW layout.
    w1 = jax.random.normal(ks[0], (hidden_channels, Cin1, 3, 3), jnp.float32) / (9 * Cin1) ** 0.5
    b1 = 0.1 * jax.random.normal(ks[1], (hidden_channels,), jnp.float32)
    gamma = 1.0 + 0.1 * jax.random.normal(ks[2], (hidden_channels,), jnp.float32)
    beta = 0.1 * jax.random.normal(ks[3], (hidden_channels,), jnp.float32)
    w2 = jax.random.normal(ks[4], (in_channels, hidden_channels, 3, 3), jnp.float32) / (9 * hidden_channels) ** 0.5
    b2 = 0.1 * jax.random.normal(ks[5], (in_channels,), jnp.float32)
    params = (w1, b1, gamma, beta, w2, b2)

    x = jax.random.normal(ks[6], (N, Cin1, H, W), jnp.float32)

    out = jax.block_until_ready(unet_output_block(x, params))
    assert out.shape == (N, in_channels, H, W)

    ref = reference(x, params)
    err = float(jnp.max(jnp.abs(out - ref)))
    # bf16 MXU inputs with f32 accumulation vs. pure-f32 reference.
    assert jnp.allclose(out, ref, atol=5e-2, rtol=5e-2), f"max abs err {err}"
    print("KERNEL_OK")
</pallas_src>

<mosaic_0001>
module attributes {stable_mosaic.version = 11 : i64} {
  func.func @kernel(%arg0: i32, %arg1: memref<1x32x256xf32, #tpu.memory_space<vmem>>, %arg2: memref<16x288xbf16, #tpu.memory_space<vmem>>, %arg3: memref<16x1xf32, #tpu.memory_space<vmem>>, %arg4: memref<16x16xf32, #tpu.memory_space<vmem>>, %arg5: memref<16x1xf32, #tpu.memory_space<vmem>>, %arg6: memref<16x1xf32, #tpu.memory_space<vmem>>, %arg7: memref<4x144xbf16, #tpu.memory_space<vmem>>, %arg8: memref<4x1xf32, #tpu.memory_space<vmem>>, %arg9: memref<3x256xf32, #tpu.memory_space<vmem>>, %arg10: memref<1x4x256xf32, #tpu.memory_space<vmem>>, %arg11: memref<32x512xf32, #tpu.memory_space<vmem>>, %arg12: memref<288x256xbf16, #tpu.memory_space<vmem>>, %arg13: memref<16x512xf32, #tpu.memory_space<vmem>>, %arg14: memref<144x256xbf16, #tpu.memory_space<vmem>>) attributes {dimension_semantics = [#tpu.dimension_semantics<parallel>], iteration_bounds = array<i64: 2>, scalar_prefetch = 0 : i64, scratch_operands = 4 : i64, tpu.core_type = #tpu.core_type<tc>, window_params = [{transform_indices = @transform_0, window_bounds = array<i64: 1, 32, 256>}, {pipeline_mode = #tpu.pipeline_mode<synchronous>, transform_indices = @transform_1, window_bounds = array<i64: 16, 288>}, {pipeline_mode = #tpu.pipeline_mode<synchronous>, transform_indices = @transform_2, window_bounds = array<i64: 16, 1>}, {pipeline_mode = #tpu.pipeline_mode<synchronous>, transform_indices = @transform_3, window_bounds = array<i64: 16, 16>}, {pipeline_mode = #tpu.pipeline_mode<synchronous>, transform_indices = @transform_4, window_bounds = array<i64: 16, 1>}, {pipeline_mode = #tpu.pipeline_mode<synchronous>, transform_indices = @transform_5, window_bounds = array<i64: 16, 1>}, {pipeline_mode = #tpu.pipeline_mode<synchronous>, transform_indices = @transform_6, window_bounds = array<i64: 4, 144>}, {pipeline_mode = #tpu.pipeline_mode<synchronous>, transform_indices = @transform_7, window_bounds = array<i64: 4, 1>}, {pipeline_mode = #tpu.pipeline_mode<synchronous>, transform_indices = @transform_8, window_bounds = array<i64: 3, 256>}, {transform_indices = @transform_9, window_bounds = array<i64: 1, 4, 256>}]} {
    %cst = arith.constant 0.000000e+00 : f32
    %0 = vector.broadcast %cst : f32 to vector<32x512xf32>
    %c0 = arith.constant 0 : index
    %c0_0 = arith.constant 0 : index
    %1 = vector.load %arg11[%c0, %c0_0] : memref<32x512xf32, #tpu.memory_space<vmem>>, vector<32x512xf32>
    tpu.vector_store %arg11[%c0, %c0_0], %0 {strides = array<i32>} : memref<32x512xf32, #tpu.memory_space<vmem>>, vector<32x512xf32>,
    %c0_1 = arith.constant 0 : index
    %c0_2 = arith.constant 0 : index
    %c0_3 = arith.constant 0 : index
    %2 = vector.load %arg1[%c0_1, %c0_2, %c0_3] : memref<1x32x256xf32, #tpu.memory_space<vmem>>, vector<1x32x256xf32>
    %3 = vector.shape_cast %2 : vector<1x32x256xf32> to vector<32x256xf32>
    %c0_4 = arith.constant 0 : index
    %c128 = arith.constant 128 : index
    %4 = vector.load %arg11[%c0_4, %c128] : memref<32x512xf32, #tpu.memory_space<vmem>>, vector<32x256xf32>
    tpu.vector_store %arg11[%c0_4, %c128], %3 {strides = array<i32>} : memref<32x512xf32, #tpu.memory_space<vmem>>, vector<32x256xf32>,
    %c0_5 = arith.constant 0 : index
    %c111 = arith.constant 111 : index
    %5 = vector.load %arg11[%c0_5, %c111] : memref<32x512xf32, #tpu.memory_space<vmem>>, vector<32x256xf32>
    %c0_6 = arith.constant 0 : index
    %c0_7 = arith.constant 0 : index
    %6 = vector.load %arg9[%c0_6, %c0_7] : memref<3x256xf32, #tpu.memory_space<vmem>>, vector<1x256xf32>
    %7 = vector.broadcast %6 : vector<1x256xf32> to vector<32x256xf32>
    %8 = arith.mulf %5, %7 : vector<32x256xf32>
    %9 = arith.truncf %8 : vector<32x256xf32> to vector<32x256xbf16>
    %c0_8 = arith.constant 0 : index
    %c0_9 = arith.constant 0 : index
    %10 = vector.load %arg12[%c0_8, %c0_9] : memref<288x256xbf16, #tpu.memory_space<vmem>>, vector<32x256xbf16>
    tpu.vector_store %arg12[%c0_8, %c0_9], %9 {strides = array<i32>} : memref<288x256xbf16, #tpu.memory_space<vmem>>, vector<32x256xbf16>,
    %c0_10 = arith.constant 0 : index
    %c112 = arith.constant 112 : index
    %11 = vector.load %arg11[%c0_10, %c112] : memref<32x512xf32, #tpu.memory_space<vmem>>, vector<32x256xf32>
    %12 = arith.truncf %11 : vector<32x256xf32> to vector<32x256xbf16>
    %c32 = arith.constant 32 : index
    %c0_11 = arith.constant 0 : index
    %13 = vector.load %arg12[%c32, %c0_11] : memref<288x256xbf16, #tpu.memory_space<vmem>>, vector<32x256xbf16>
    tpu.vector_store %arg12[%c32, %c0_11], %12 {strides = array<i32>} : memref<288x256xbf16, #tpu.memory_space<vmem>>, vector<32x256xbf16>,
    %c0_12 = arith.constant 0 : index
    %c113 = arith.constant 113 : index
    %14 = vector.load %arg11[%c0_12, %c113] : memref<32x512xf32, #tpu.memory_space<vmem>>, vector<32x256xf32>
    %c2 = arith.constant 2 : index
    %c0_13 = arith.constant 0 : index
    %15 = vector.load %arg9[%c2, %c0_13] : memref<3x256xf32, #tpu.memory_space<vmem>>, vector<1x256xf32>
    %16 = vector.broadcast %15 : vector<1x256xf32> to vector<32x256xf32>
    %17 = arith.mulf %14, %16 : vector<32x256xf32>
    %18 = arith.truncf %17 : vector<32x256xf32> to vector<32x256xbf16>
    %c64 = arith.constant 64 : index
    %c0_14 = arith.constant 0 : index
    %19 = vector.load %arg12[%c64, %c0_14] : memref<288x256xbf16, #tpu.memory_space<vmem>>, vector<32x256xbf16>
    tpu.vector_store %arg12[%c64, %c0_14], %18 {strides = array<i32>} : memref<288x256xbf16, #tpu.memory_space<vmem>>, vector<32x256xbf16>,
    %c0_15 = arith.constant 0 : index
    %c127 = arith.constant 127 : index
    %20 = vector.load %arg11[%c0_15, %c127] : memref<32x512xf32, #tpu.memory_space<vmem>>, vector<32x256xf32>
    %c0_16 = arith.constant 0 : index
    %c0_17 = arith.constant 0 : index
    %21 = vector.load %arg9[%c0_16, %c0_17] : memref<3x256xf32, #tpu.memory_space<vmem>>, vector<1x256xf32>
    %22 = vector.broadcast %21 : vector<1x256xf32> to vector<32x256xf32>
    %23 = arith.mulf %20, %22 : vector<32x256xf32>
    %24 = arith.truncf %23 : vector<32x256xf32> to vector<32x256xbf16>
    %c96 = arith.constant 96 : index
    %c0_18 = arith.constant 0 : index
    %25 = vector.load %arg12[%c96, %c0_18] : memref<288x256xbf16, #tpu.memory_space<vmem>>, vector<32x256xbf16>
    tpu.vector_store %arg12[%c96, %c0_18], %24 {strides = array<i32>} : memref<288x256xbf16, #tpu.memory_space<vmem>>, vector<32x256xbf16>,
    %c0_19 = arith.constant 0 : index
    %c128_20 = arith.constant 128 : index
    %26 = vector.load %arg11[%c0_19, %c128_20] : memref<32x512xf32, #tpu.memory_space<vmem>>, vector<32x256xf32>
    %27 = arith.truncf %26 : vector<32x256xf32> to vector<32x256xbf16>
    %c128_21 = arith.constant 128 : index
    %c0_22 = arith.constant 0 : index
    %28 = vector.load %arg12[%c128_21, %c0_22] : memref<288x256xbf16, #tpu.memory_space<vmem>>, vector<32x256xbf16>
    tpu.vector_store %arg12[%c128_21, %c0_22], %27 {strides = array<i32>} : memref<288x256xbf16, #tpu.memory_space<vmem>>, vector<32x256xbf16>,
    %c0_23 = arith.constant 0 : index
    %c129 = arith.constant 129 : index
    %29 = vector.load %arg11[%c0_23, %c129] : memref<32x512xf32, #tpu.memory_space<vmem>>, vector<32x256xf32>
    %c2_24 = arith.constant 2 : index
    %c0_25 = arith.constant 0 : index
    %30 = vector.load %arg9[%c2_24, %c0_25] : memref<3x256xf32, #tpu.memory_space<vmem>>, vector<1x256xf32>
    %31 = vector.broadcast %30 : vector<1x256xf32> to vector<32x256xf32>
    %32 = arith.mulf %29, %31 : vector<32x256xf32>
    %33 = arith.truncf %32 : vector<32x256xf32> to vector<32x256xbf16>
    %c160 = arith.constant 160 : index
    %c0_26 = arith.constant 0 : index
    %34 = vector.load %arg12[%c160, %c0_26] : memref<288x256xbf16, #tpu.memory_space<vmem>>, vector<32x256xbf16>
    tpu.vector_store %arg12[%c160, %c0_26], %33 {strides = array<i32>} : memref<288x256xbf16, #tpu.memory_space<vmem>>, vector<32x256xbf16>,
    %c0_27 = arith.constant 0 : index
    %c143 = arith.constant 143 : index
    %35 = vector.load %arg11[%c0_27, %c143] : memref<32x512xf32, #tpu.memory_space<vmem>>, vector<32x256xf32>
    %c0_28 = arith.constant 0 : index
    %c0_29 = arith.constant 0 : index
    %36 = vector.load %arg9[%c0_28, %c0_29] : memref<3x256xf32, #tpu.memory_space<vmem>>, vector<1x256xf32>
    %37 = vector.broadcast %36 : vector<1x256xf32> to vector<32x256xf32>
    %38 = arith.mulf %35, %37 : vector<32x256xf32>
    %39 = arith.truncf %38 : vector<32x256xf32> to vector<32x256xbf16>
    %c192 = arith.constant 192 : index
    %c0_30 = arith.constant 0 : index
    %40 = vector.load %arg12[%c192, %c0_30] : memref<288x256xbf16, #tpu.memory_space<vmem>>, vector<32x256xbf16>
    tpu.vector_store %arg12[%c192, %c0_30], %39 {strides = array<i32>} : memref<288x256xbf16, #tpu.memory_space<vmem>>, vector<32x256xbf16>,
    %c0_31 = arith.constant 0 : index
    %c144 = arith.constant 144 : index
    %41 = vector.load %arg11[%c0_31, %c144] : memref<32x512xf32, #tpu.memory_space<vmem>>, vector<32x256xf32>
    %42 = arith.truncf %41 : vector<32x256xf32> to vector<32x256xbf16>
    %c224 = arith.constant 224 : index
    %c0_32 = arith.constant 0 : index
    %43 = vector.load %arg12[%c224, %c0_32] : memref<288x256xbf16, #tpu.memory_space<vmem>>, vector<32x256xbf16>
    tpu.vector_store %arg12[%c224, %c0_32], %42 {strides = array<i32>} : memref<288x256xbf16, #tpu.memory_space<vmem>>, vector<32x256xbf16>,
    %c0_33 = arith.constant 0 : index
    %c145 = arith.constant 145 : index
    %44 = vector.load %arg11[%c0_33, %c145] : memref<32x512xf32, #tpu.memory_space<vmem>>, vector<32x256xf32>
    %c2_34 = arith.constant 2 : index
    %c0_35 = arith.constant 0 : index
    %45 = vector.load %arg9[%c2_34, %c0_35] : memref<3x256xf32, #tpu.memory_space<vmem>>, vector<1x256xf32>
    %46 = vector.broadcast %45 : vector<1x256xf32> to vector<32x256xf32>
    %47 = arith.mulf %44, %46 : vector<32x256xf32>
    %48 = arith.truncf %47 : vector<32x256xf32> to vector<32x256xbf16>
    %c256 = arith.constant 256 : index
    %c0_36 = arith.constant 0 : index
    %49 = vector.load %arg12[%c256, %c0_36] : memref<288x256xbf16, #tpu.memory_space<vmem>>, vector<32x256xbf16>
    tpu.vector_store %arg12[%c256, %c0_36], %48 {strides = array<i32>} : memref<288x256xbf16, #tpu.memory_space<vmem>>, vector<32x256xbf16>,
    %c0_37 = arith.constant 0 : index
    %c0_38 = arith.constant 0 : index
    %50 = vector.load %arg2[%c0_37, %c0_38] : memref<16x288xbf16, #tpu.memory_space<vmem>>, vector<16x288xbf16>
    %c0_39 = arith.constant 0 : index
    %c0_40 = arith.constant 0 : index
    %51 = vector.load %arg12[%c0_39, %c0_40] : memref<288x256xbf16, #tpu.memory_space<vmem>>, vector<288x256xbf16>
    %cst_41 = arith.constant dense<0.000000e+00> : vector<16x256xf32>
    %52 = tpu.matmul %50, %51, %cst_41 {dimension_numbers = #tpu.dot_dimension_numbers<[1], [0], [0], [1], [0, 0, 1, 1], [], []>} : vector<16x288xbf16>, vector<288x256xbf16>, vector<16x256xf32> -> vector<16x256xf32>
    %c0_42 = arith.constant 0 : index
    %c0_43 = arith.constant 0 : index
    %53 = vector.load %arg3[%c0_42, %c0_43] : memref<16x1xf32, #tpu.memory_space<vmem>>, vector<16x1xf32>
    %54 = vector.broadcast %53 : vector<16x1xf32> to vector<16x256xf32>
    %55 = arith.addf %52, %54 : vector<16x256xf32>
    %cst_44 = arith.constant dense<0.000000e+00> : vector<16xf32>
    %56 = vector.multi_reduction <add>, %55, %cst_44 [1] : vector<16x256xf32> to vector<16xf32>
    %57 = vector.shape_cast %56 : vector<16xf32> to vector<16x1xf32>
    %58 = arith.mulf %55, %55 : vector<16x256xf32>
    %cst_45 = arith.constant dense<0.000000e+00> : vector<16xf32>
    %59 = vector.multi_reduction <add>, %58, %cst_45 [1] : vector<16x256xf32> to vector<16xf32>
    %60 = vector.shape_cast %59 : vector<16xf32> to vector<16x1xf32>
    %c0_46 = arith.constant 0 : index
    %c0_47 = arith.constant 0 : index
    %61 = vector.load %arg4[%c0_46, %c0_47] : memref<16x16xf32, #tpu.memory_space<vmem>>, vector<16x16xf32>
    %cst_48 = arith.constant dense<0.000000e+00> : vector<16x1xf32>
    %62 = tpu.matmul %61, %57, %cst_48 {dimension_numbers = #tpu.dot_dimension_numbers<[1], [0], [0], [1], [0, 0, 1, 1], [], []>} : vector<16x16xf32>, vector<16x1xf32>, vector<16x1xf32> -> vector<16x1xf32>
    %c0_49 = arith.constant 0 : index
    %c0_50 = arith.constant 0 : index
    %63 = vector.load %arg4[%c0_49, %c0_50] : memref<16x16xf32, #tpu.memory_space<vmem>>, vector<16x16xf32>
    %cst_51 = arith.constant dense<0.000000e+00> : vector<16x1xf32>
    %64 = tpu.matmul %63, %60, %cst_51 {dimension_numbers = #tpu.dot_dimension_numbers<[1], [0], [0], [1], [0, 0, 1, 1], [], []>} : vector<16x16xf32>, vector<16x1xf32>, vector<16x1xf32> -> vector<16x1xf32>
    %65 = arith.mulf %62, %62 : vector<16x1xf32>
    %66 = arith.subf %64, %65 : vector<16x1xf32>
    %cst_52 = arith.constant 0.000000e+00 : f32
    %67 = vector.broadcast %cst_52 : f32 to vector<16x1xf32>
    %68 = arith.maximumf %66, %67 : vector<16x1xf32>
    %cst_53 = arith.constant 9.99999974E-6 : f32
    %69 = vector.broadcast %cst_53 : f32 to vector<16x1xf32>
    %70 = arith.addf %68, %69 : vector<16x1xf32>
    %71 = math.rsqrt %70 : vector<16x1xf32>
    %72 = vector.broadcast %62 : vector<16x1xf32> to vector<16x256xf32>
    %73 = arith.subf %55, %72 : vector<16x256xf32>
    %c0_54 = arith.constant 0 : index
    %c0_55 = arith.constant 0 : index
    %74 = vector.load %arg5[%c0_54, %c0_55] : memref<16x1xf32, #tpu.memory_space<vmem>>, vector<16x1xf32>
    %75 = arith.mulf %71, %74 : vector<16x1xf32>
    %76 = vector.broadcast %75 : vector<16x1xf32> to vector<16x256xf32>
    %77 = arith.mulf %73, %76 : vector<16x256xf32>
    %c0_56 = arith.constant 0 : index
    %c0_57 = arith.constant 0 : index
    %78 = vector.load %arg6[%c0_56, %c0_57] : memref<16x1xf32, #tpu.memory_space<vmem>>, vector<16x1xf32>
    %79 = vector.broadcast %78 : vector<16x1xf32> to vector<16x256xf32>
    %80 = arith.addf %77, %79 : vector<16x256xf32>
    %cst_58 = arith.constant 0.000000e+00 : f32
    %81 = vector.broadcast %cst_58 : f32 to vector<16x256xf32>
    %82 = arith.maximumf %80, %81 : vector<16x256xf32>
    %cst_59 = arith.constant 0.000000e+00 : f32
    %83 = vector.broadcast %cst_59 : f32 to vector<16x512xf32>
    %c0_60 = arith.constant 0 : index
    %c0_61 = arith.constant 0 : index
    %84 = vector.load %arg13[%c0_60, %c0_61] : memref<16x512xf32, #tpu.memory_space<vmem>>, vector<16x512xf32>
    tpu.vector_store %arg13[%c0_60, %c0_61], %83 {strides = array<i32>} : memref<16x512xf32, #tpu.memory_space<vmem>>, vector<16x512xf32>,
    %c0_62 = arith.constant 0 : index
    %c128_63 = arith.constant 128 : index
    %85 = vector.load %arg13[%c0_62, %c128_63] : memref<16x512xf32, #tpu.memory_space<vmem>>, vector<16x256xf32>
    tpu.vector_store %arg13[%c0_62, %c128_63], %82 {strides = array<i32>} : memref<16x512xf32, #tpu.memory_space<vmem>>, vector<16x256xf32>,
    %c0_64 = arith.constant 0 : index
    %c111_65 = arith.constant 111 : index
    %86 = vector.load %arg13[%c0_64, %c111_65] : memref<16x512xf32, #tpu.memory_space<vmem>>, vector<16x256xf32>
    %c0_66 = arith.constant 0 : index
    %c0_67 = arith.constant 0 : index
    %87 = vector.load %arg9[%c0_66, %c0_67] : memref<3x256xf32, #tpu.memory_space<vmem>>, vector<1x256xf32>
    %88 = vector.broadcast %87 : vector<1x256xf32> to vector<16x256xf32>
    %89 = arith.mulf %86, %88 : vector<16x256xf32>
    %90 = arith.truncf %89 : vector<16x256xf32> to vector<16x256xbf16>
    %c0_68 = arith.constant 0 : index
    %c0_69 = arith.constant 0 : index
    %91 = vector.load %arg14[%c0_68, %c0_69] : memref<144x256xbf16, #tpu.memory_space<vmem>>, vector<16x256xbf16>
    tpu.vector_store %arg14[%c0_68, %c0_69], %90 {strides = array<i32>} : memref<144x256xbf16, #tpu.memory_space<vmem>>, vector<16x256xbf16>,
    %c0_70 = arith.constant 0 : index
    %c112_71 = arith.constant 112 : index
    %92 = vector.load %arg13[%c0_70, %c112_71] : memref<16x512xf32, #tpu.memory_space<vmem>>, vector<16x256xf32>
    %93 = arith.truncf %92 : vector<16x256xf32> to vector<16x256xbf16>
    %c16 = arith.constant 16 : index
    %c0_72 = arith.constant 0 : index
    %94 = vector.load %arg14[%c16, %c0_72] : memref<144x256xbf16, #tpu.memory_space<vmem>>, vector<16x256xbf16>
    tpu.vector_store %arg14[%c16, %c0_72], %93 {strides = array<i32>} : memref<144x256xbf16, #tpu.memory_space<vmem>>, vector<16x256xbf16>,
    %c0_73 = arith.constant 0 : index
    %c113_74 = arith.constant 113 : index
    %95 = vector.load %arg13[%c0_73, %c113_74] : memref<16x512xf32, #tpu.memory_space<vmem>>, vector<16x256xf32>
    %c2_75 = arith.constant 2 : index
    %c0_76 = arith.constant 0 : index
    %96 = vector.load %arg9[%c2_75, %c0_76] : memref<3x256xf32, #tpu.memory_space<vmem>>, vector<1x256xf32>
    %97 = vector.broadcast %96 : vector<1x256xf32> to vector<16x256xf32>
    %98 = arith.mulf %95, %97 : vector<16x256xf32>
    %99 = arith.truncf %98 : vector<16x256xf32> to vector<16x256xbf16>
    %c32_77 = arith.constant 32 : index
    %c0_78 = arith.constant 0 : index
    %100 = vector.load %arg14[%c32_77, %c0_78] : memref<144x256xbf16, #tpu.memory_space<vmem>>, vector<16x256xbf16>
    tpu.vector_store %arg14[%c32_77, %c0_78], %99 {strides = array<i32>} : memref<144x256xbf16, #tpu.memory_space<vmem>>, vector<16x256xbf16>,
    %c0_79 = arith.constant 0 : index
    %c127_80 = arith.constant 127 : index
    %101 = vector.load %arg13[%c0_79, %c127_80] : memref<16x512xf32, #tpu.memory_space<vmem>>, vector<16x256xf32>
    %c0_81 = arith.constant 0 : index
    %c0_82 = arith.constant 0 : index
    %102 = vector.load %arg9[%c0_81, %c0_82] : memref<3x256xf32, #tpu.memory_space<vmem>>, vector<1x256xf32>
    %103 = vector.broadcast %102 : vector<1x256xf32> to vector<16x256xf32>
    %104 = arith.mulf %101, %103 : vector<16x256xf32>
    %105 = arith.truncf %104 : vector<16x256xf32> to vector<16x256xbf16>
    %c48 = arith.constant 48 : index
    %c0_83 = arith.constant 0 : index
    %106 = vector.load %arg14[%c48, %c0_83] : memref<144x256xbf16, #tpu.memory_space<vmem>>, vector<16x256xbf16>
    tpu.vector_store %arg14[%c48, %c0_83], %105 {strides = array<i32>} : memref<144x256xbf16, #tpu.memory_space<vmem>>, vector<16x256xbf16>,
    %c0_84 = arith.constant 0 : index
    %c128_85 = arith.constant 128 : index
    %107 = vector.load %arg13[%c0_84, %c128_85] : memref<16x512xf32, #tpu.memory_space<vmem>>, vector<16x256xf32>
    %108 = arith.truncf %107 : vector<16x256xf32> to vector<16x256xbf16>
    %c64_86 = arith.constant 64 : index
    %c0_87 = arith.constant 0 : index
    %109 = vector.load %arg14[%c64_86, %c0_87] : memref<144x256xbf16, #tpu.memory_space<vmem>>, vector<16x256xbf16>
    tpu.vector_store %arg14[%c64_86, %c0_87], %108 {strides = array<i32>} : memref<144x256xbf16, #tpu.memory_space<vmem>>, vector<16x256xbf16>,
    %c0_88 = arith.constant 0 : index
    %c129_89 = arith.constant 129 : index
    %110 = vector.load %arg13[%c0_88, %c129_89] : memref<16x512xf32, #tpu.memory_space<vmem>>, vector<16x256xf32>
    %c2_90 = arith.constant 2 : index
    %c0_91 = arith.constant 0 : index
    %111 = vector.load %arg9[%c2_90, %c0_91] : memref<3x256xf32, #tpu.memory_space<vmem>>, vector<1x256xf32>
    %112 = vector.broadcast %111 : vector<1x256xf32> to vector<16x256xf32>
    %113 = arith.mulf %110, %112 : vector<16x256xf32>
    %114 = arith.truncf %113 : vector<16x256xf32> to vector<16x256xbf16>
    %c80 = arith.constant 80 : index
    %c0_92 = arith.constant 0 : index
    %115 = vector.load %arg14[%c80, %c0_92] : memref<144x256xbf16, #tpu.memory_space<vmem>>, vector<16x256xbf16>
    tpu.vector_store %arg14[%c80, %c0_92], %114 {strides = array<i32>} : memref<144x256xbf16, #tpu.memory_space<vmem>>, vector<16x256xbf16>,
    %c0_93 = arith.constant 0 : index
    %c143_94 = arith.constant 143 : index
    %116 = vector.load %arg13[%c0_93, %c143_94] : memref<16x512xf32, #tpu.memory_space<vmem>>, vector<16x256xf32>
    %c0_95 = arith.constant 0 : index
    %c0_96 = arith.constant 0 : index
    %117 = vector.load %arg9[%c0_95, %c0_96] : memref<3x256xf32, #tpu.memory_space<vmem>>, vector<1x256xf32>
    %118 = vector.broadcast %117 : vector<1x256xf32> to vector<16x256xf32>
    %119 = arith.mulf %116, %118 : vector<16x256xf32>
    %120 = arith.truncf %119 : vector<16x256xf32> to vector<16x256xbf16>
    %c96_97 = arith.constant 96 : index
    %c0_98 = arith.constant 0 : index
    %121 = vector.load %arg14[%c96_97, %c0_98] : memref<144x256xbf16, #tpu.memory_space<vmem>>, vector<16x256xbf16>
    tpu.vector_store %arg14[%c96_97, %c0_98], %120 {strides = array<i32>} : memref<144x256xbf16, #tpu.memory_space<vmem>>, vector<16x256xbf16>,
    %c0_99 = arith.constant 0 : index
    %c144_100 = arith.constant 144 : index
    %122 = vector.load %arg13[%c0_99, %c144_100] : memref<16x512xf32, #tpu.memory_space<vmem>>, vector<16x256xf32>
    %123 = arith.truncf %122 : vector<16x256xf32> to vector<16x256xbf16>
    %c112_101 = arith.constant 112 : index
    %c0_102 = arith.constant 0 : index
    %124 = vector.load %arg14[%c112_101, %c0_102] : memref<144x256xbf16, #tpu.memory_space<vmem>>, vector<16x256xbf16>
    tpu.vector_store %arg14[%c112_101, %c0_102], %123 {strides = array<i32>} : memref<144x256xbf16, #tpu.memory_space<vmem>>, vector<16x256xbf16>,
    %c0_103 = arith.constant 0 : index
    %c145_104 = arith.constant 145 : index
    %125 = vector.load %arg13[%c0_103, %c145_104] : memref<16x512xf32, #tpu.memory_space<vmem>>, vector<16x256xf32>
    %c2_105 = arith.constant 2 : index
    %c0_106 = arith.constant 0 : index
    %126 = vector.load %arg9[%c2_105, %c0_106] : memref<3x256xf32, #tpu.memory_space<vmem>>, vector<1x256xf32>
    %127 = vector.broadcast %126 : vector<1x256xf32> to vector<16x256xf32>
    %128 = arith.mulf %125, %127 : vector<16x256xf32>
    %129 = arith.truncf %128 : vector<16x256xf32> to vector<16x256xbf16>
    %c128_107 = arith.constant 128 : index
    %c0_108 = arith.constant 0 : index
    %130 = vector.load %arg14[%c128_107, %c0_108] : memref<144x256xbf16, #tpu.memory_space<vmem>>, vector<16x256xbf16>
    tpu.vector_store %arg14[%c128_107, %c0_108], %129 {strides = array<i32>} : memref<144x256xbf16, #tpu.memory_space<vmem>>, vector<16x256xbf16>,
    %c0_109 = arith.constant 0 : index
    %c0_110 = arith.constant 0 : index
    %131 = vector.load %arg7[%c0_109, %c0_110] : memref<4x144xbf16, #tpu.memory_space<vmem>>, vector<4x144xbf16>
    %c0_111 = arith.constant 0 : index
    %c0_112 = arith.constant 0 : index
    %132 = vector.load %arg14[%c0_111, %c0_112] : memref<144x256xbf16, #tpu.memory_space<vmem>>, vector<144x256xbf16>
    %cst_113 = arith.constant dense<0.000000e+00> : vector<4x256xf32>
    %133 = tpu.matmul %131, %132, %cst_113 {dimension_numbers = #tpu.dot_dimension_numbers<[1], [0], [0], [1], [0, 0, 1, 1], [], []>} : vector<4x144xbf16>, vector<144x256xbf16>, vector<4x256xf32> -> vector<4x256xf32>
    %c0_114 = arith.constant 0 : index
    %c0_115 = arith.constant 0 : index
    %134 = vector.load %arg8[%c0_114, %c0_115] : memref<4x1xf32, #tpu.memory_space<vmem>>, vector<4x1xf32>
    %135 = vector.broadcast %134 : vector<4x1xf32> to vector<4x256xf32>
    %136 = arith.addf %133, %135 : vector<4x256xf32>
    %c0_116 = arith.constant 0 : index
    %c0_117 = arith.constant 0 : index
    %c0_118 = arith.constant 0 : index
    %137 = vector.load %arg10[%c0_116, %c0_117, %c0_118] : memref<1x4x256xf32, #tpu.memory_space<vmem>>, vector<1x4x256xf32>
    %138 = vector.shape_cast %137 : vector<1x4x256xf32> to vector<4x256xf32>
    %139 = vector.shape_cast %136 : vector<4x256xf32> to vector<1x4x256xf32>
    tpu.vector_store %arg10[%c0_116, %c0_117, %c0_118], %139 {strides = array<i32>} : memref<1x4x256xf32, #tpu.memory_space<vmem>>, vector<1x4x256xf32>,
    return
  }
  func.func @transform_0(%arg0: i32) -> (i32, i32, i32) {
    %c0_i32 = arith.constant 0 : i32
    %c0_i32_0 = arith.constant 0 : i32
    %c0_i32_1 = arith.constant 0 : i32
    return %arg0, %c0_i32, %c0_i32_0 : i32, i32, i32
  }
  func.func @transform_1(%arg0: i32) -> (i32, i32) {
    %c0_i32 = arith.constant 0 : i32
    %c0_i32_0 = arith.constant 0 : i32
    %c0_i32_1 = arith.constant 0 : i32
    return %c0_i32, %c0_i32_0 : i32, i32
  }
  func.func @transform_2(%arg0: i32) -> (i32, i32) {
    %c0_i32 = arith.constant 0 : i32
    %c0_i32_0 = arith.constant 0 : i32
    %c0_i32_1 = arith.constant 0 : i32
    return %c0_i32, %c0_i32_0 : i32, i32
  }
  func.func @transform_3(%arg0: i32) -> (i32, i32) {
    %c0_i32 = arith.constant 0 : i32
    %c0_i32_0 = arith.constant 0 : i32
    %c0_i32_1 = arith.constant 0 : i32
    return %c0_i32, %c0_i32_0 : i32, i32
  }
  func.func @transform_4(%arg0: i32) -> (i32, i32) {
    %c0_i32 = arith.constant 0 : i32
    %c0_i32_0 = arith.constant 0 : i32
    %c0_i32_1 = arith.constant 0 : i32
    return %c0_i32, %c0_i32_0 : i32, i32
  }
  func.func @transform_5(%arg0: i32) -> (i32, i32) {
    %c0_i32 = arith.constant 0 : i32
    %c0_i32_0 = arith.constant 0 : i32
    %c0_i32_1 = arith.constant 0 : i32
    return %c0_i32, %c0_i32_0 : i32, i32
  }
  func.func @transform_6(%arg0: i32) -> (i32, i32) {
    %c0_i32 = arith.constant 0 : i32
    %c0_i32_0 = arith.constant 0 : i32
    %c0_i32_1 = arith.constant 0 : i32
    return %c0_i32, %c0_i32_0 : i32, i32
  }
  func.func @transform_7(%arg0: i32) -> (i32, i32) {
    %c0_i32 = arith.constant 0 : i32
    %c0_i32_0 = arith.constant 0 : i32
    %c0_i32_1 = arith.constant 0 : i32
    return %c0_i32, %c0_i32_0 : i32, i32
  }
  func.func @transform_8(%arg0: i32) -> (i32, i32) {
    %c0_i32 = arith.constant 0 : i32
    %c0_i32_0 = arith.constant 0 : i32
    %c0_i32_1 = arith.constant 0 : i32
    return %c0_i32, %c0_i32_0 : i32, i32
  }
  func.func @transform_9(%arg0: i32) -> (i32, i32, i32) {
    %c0_i32 = arith.constant 0 : i32
    %c0_i32_0 = arith.constant 0 : i32
    %c0_i32_1 = arith.constant 0 : i32
    return %arg0, %c0_i32, %c0_i32_0 : i32, i32, i32
  }
}

</mosaic_0001>

<llo_original>
// kernel: unet_output_block.1
$region0: #{unet_output_block.1}
  #allocation0 [shape = 'u32[]', space=smem, size = 0x4, offset = 0x4, fixed_abs, tag = 'smem constant byte address 0x4 - core index']
  #allocation1 [shape = 'u32[144,128]{1,0:T(1,128)}', space=vmem, size = 0x12000, scoped, tag = 'internal scratch']
  #allocation2 [shape = 'f32[32,512]{1,0:T(8,128)}', space=vmem, size = 0x10000, scoped, tag = 'scratch operand']
  #allocation3 [shape = 'bf16[288,256]{1,0:T(8,128)(2,1)}', space=vmem, size = 0x24000, scoped, tag = 'scratch operand']
  #allocation4 [shape = 'f32[16,512]{1,0:T(8,128)}', space=vmem, size = 0x8000, scoped, tag = 'scratch operand']
  #allocation5 [shape = 'bf16[144,256]{1,0:T(8,128)(2,1)}', space=vmem, size = 0x12000, scoped, tag = 'scratch operand']
  %s0 = inlined_call_operand.vmem [shape: f32[2,32,256], index: 0, kind: input, shape index: {}]
  %s1 = inlined_call_operand.vmem [shape: bf16[16,288], index: 1, kind: input, shape index: {}]
  %s2 = inlined_call_operand.vmem [shape: f32[16,1], index: 2, kind: input, shape index: {}]
  %s3 = inlined_call_operand.vmem [shape: f32[16,16], index: 3, kind: input, shape index: {}]
  %s4 = inlined_call_operand.vmem [shape: f32[16,1], index: 4, kind: input, shape index: {}]
  %s5 = inlined_call_operand.vmem [shape: f32[16,1], index: 5, kind: input, shape index: {}]
  %s6 = inlined_call_operand.vmem [shape: bf16[4,144], index: 6, kind: input, shape index: {}]
  %s7 = inlined_call_operand.vmem [shape: f32[4,1], index: 7, kind: input, shape index: {}]
  %s8 = inlined_call_operand.vmem [shape: f32[3,256], index: 8, kind: input, shape index: {}]
  %s9 = inlined_call_operand.vmem [shape: f32[2,4,256], index: 9, kind: output, shape index: {}]
  %s10 = sld [smem:[#allocation0]]
  $region69: #{unet_output_block.1} parent=0
    _
  %s12 = ssub.s32 1, %s10
  %s13 = scalar_select 0, %s12, %s10
  loop: start=0, step=1, limit=4
  $region2: #{unet_output_block.1} parent=0 // loop_pre_header
    _
  $region3: #{unet_output_block.1} parent=0 // loop_header
    %s15 = sphi 0, %s19
    %p16 = scmp.ge.s32.totalorder %s15, 4
    %s25 = sphi 0, %s27
    %s28 = sphi 0, %s25
    %s29 = sphi 0, %s28
    %s45 = sphi 0, %s29
    %s49 = sphi 0, %s49
    %s51 = sphi 0, %s49
    %s52 = sphi 0, %s51
    %s66 = sphi 0, %s52
    %s70 = sphi 0, %s70
    %s72 = sphi 0, %s70
    %s73 = sphi 0, %s72
    %s87 = sphi 0, %s73
    %s91 = sphi 0, %s91
    %s93 = sphi 0, %s91
    %s94 = sphi 0, %s93
    %s108 = sphi 0, %s94
    %s112 = sphi 0, %s112
    %s114 = sphi 0, %s112
    %s115 = sphi 0, %s114
    %s129 = sphi 0, %s115
    %s133 = sphi 0, %s133
    %s135 = sphi 0, %s133
    %s136 = sphi 0, %s135
    %s150 = sphi 0, %s136
    %s154 = sphi 0, %s154
    %s156 = sphi 0, %s154
    %s157 = sphi 0, %s156
    %s171 = sphi 0, %s157
    %s175 = sphi 0, %s175
    %s177 = sphi 0, %s175
    %s178 = sphi 0, %s177
    %s192 = sphi 0, %s178
    %s196 = sphi 0, %s196
    %s198 = sphi 0, %s196
    %s199 = sphi 0, %s198
    %s213 = sphi 0, %s199
    %s219 = sphi 0, %s221
    %s222 = sphi 0, %s219
    %s223 = sphi 0, %s222
    %s239 = sphi 0, %s223
  $region4: #{unet_output_block.1} parent=0 // loop_header_branch
    %18 = sbr.rel (%p16) target = $region8
  $region5: #{unet_output_block.1} parent=0 // loop_body
    %s20 = ssub.s32 %s15, 1
    %s21 = ssub.s32 %s15, 2
    %s22 = sadd.s32 %s15, 1
    %s23 = ssub.s32 %s15, %s22
    %p24 = scmp.eq.s32.totalorder %s23, 0
    %s26 = sadd.s32 %s25, 1
    %s27 = scalar_select %p24, %s25, %s26
    %p30 = pneg %p24
    %p31 = scmp.eq.s32.totalorder %s15, 1
    %p32 = por %p30, %p31
    %p33 = scmp.ne.s32.totalorder %s25, %s28
    %p34 = scmp.eq.s32.totalorder %s15, 0
    %p35 = por %p33, %p34
    %p36 = scmp.ne.s32.totalorder %s25, %s28
    %p37 = scmp.eq.s32.totalorder %s20, 1
    %p38 = por %p36, %p37
    %p39 = scmp.ne.s32.totalorder %s28, %s29
    %p40 = scmp.eq.s32.totalorder %s20, 0
    %p41 = por %p39, %p40
    %p42 = scmp.ne.s32.totalorder %s28, %s29
    %p43 = scmp.eq.s32.totalorder %s21, 1
    %p44 = por %p42, %p43
    %p46 = scmp.ne.s32.totalorder %s29, %s45
    %p47 = scmp.eq.s32.totalorder %s21, 0
    %p48 = por %p46, %p47
    %s50 = sadd.s32 %s49, 1
    %p53 = scmp.eq.s32.totalorder %s15, 1
    %p54 = scmp.ne.s32.totalorder %s49, %s51
    %p55 = scmp.eq.s32.totalorder %s15, 0
    %p56 = por %p54, %p55
    %p57 = scmp.ne.s32.totalorder %s49, %s51
    %p58 = scmp.eq.s32.totalorder %s20, 1
    %p59 = por %p57, %p58
    %p60 = scmp.ne.s32.totalorder %s51, %s52
    %p61 = scmp.eq.s32.totalorder %s20, 0
    %p62 = por %p60, %p61
    %p63 = scmp.ne.s32.totalorder %s51, %s52
    %p64 = scmp.eq.s32.totalorder %s21, 1
    %p65 = por %p63, %p64
    %p67 = scmp.ne.s32.totalorder %s52, %s66
    %p68 = scmp.eq.s32.totalorder %s21, 0
    %p69 = por %p67, %p68
    %s71 = sadd.s32 %s70, 1
    %p74 = scmp.eq.s32.totalorder %s15, 1
    %p75 = scmp.ne.s32.totalorder %s70, %s72
    %p76 = scmp.eq.s32.totalorder %s15, 0
    %p77 = por %p75, %p76
    %p78 = scmp.ne.s32.totalorder %s70, %s72
    %p79 = scmp.eq.s32.totalorder %s20, 1
    %p80 = por %p78, %p79
    %p81 = scmp.ne.s32.totalorder %s72, %s73
    %p82 = scmp.eq.s32.totalorder %s20, 0
    %p83 = por %p81, %p82
    %p84 = scmp.ne.s32.totalorder %s72, %s73
    %p85 = scmp.eq.s32.totalorder %s21, 1
    %p86 = por %p84, %p85
    %p88 = scmp.ne.s32.totalorder %s73, %s87
    %p89 = scmp.eq.s32.totalorder %s21, 0
    %p90 = por %p88, %p89
    %s92 = sadd.s32 %s91, 1
    %p95 = scmp.eq.s32.totalorder %s15, 1
    %p96 = scmp.ne.s32.totalorder %s91, %s93
    %p97 = scmp.eq.s32.totalorder %s15, 0
    %p98 = por %p96, %p97
    %p99 = scmp.ne.s32.totalorder %s91, %s93
    %p100 = scmp.eq.s32.totalorder %s20, 1
    %p101 = por %p99, %p100
    %p102 = scmp.ne.s32.totalorder %s93, %s94
    %p103 = scmp.eq.s32.totalorder %s20, 0
    %p104 = por %p102, %p103
    %p105 = scmp.ne.s32.totalorder %s93, %s94
    %p106 = scmp.eq.s32.totalorder %s21, 1
    %p107 = por %p105, %p106
    %p109 = scmp.ne.s32.totalorder %s94, %s108
    %p110 = scmp.eq.s32.totalorder %s21, 0
    %p111 = por %p109, %p110
    %s113 = sadd.s32 %s112, 1
    %p116 = scmp.eq.s32.totalorder %s15, 1
    %p117 = scmp.ne.s32.totalorder %s112, %s114
    %p118 = scmp.eq.s32.totalorder %s15, 0
    %p119 = por %p117, %p118
    %p120 = scmp.ne.s32.totalorder %s112, %s114
    %p121 = scmp.eq.s32.totalorder %s20, 1
    %p122 = por %p120, %p121
    %p123 = scmp.ne.s32.totalorder %s114, %s115
    %p124 = scmp.eq.s32.totalorder %s20, 0
    %p125 = por %p123, %p124
    %p126 = scmp.ne.s32.totalorder %s114, %s115
    %p127 = scmp.eq.s32.totalorder %s21, 1
    %p128 = por %p126, %p127
    %p130 = scmp.ne.s32.totalorder %s115, %s129
    %p131 = scmp.eq.s32.totalorder %s21, 0
    %p132 = por %p130, %p131
    %s134 = sadd.s32 %s133, 1
    %p137 = scmp.eq.s32.totalorder %s15, 1
    %p138 = scmp.ne.s32.totalorder %s133, %s135
    %p139 = scmp.eq.s32.totalorder %s15, 0
    %p140 = por %p138, %p139
    %p141 = scmp.ne.s32.totalorder %s133, %s135
    %p142 = scmp.eq.s32.totalorder %s20, 1
    %p143 = por %p141, %p142
    %p144 = scmp.ne.s32.totalorder %s135, %s136
    %p145 = scmp.eq.s32.totalorder %s20, 0
    %p146 = por %p144, %p145
    %p147 = scmp.ne.s32.totalorder %s135, %s136
    %p148 = scmp.eq.s32.totalorder %s21, 1
    %p149 = por %p147, %p148
    %p151 = scmp.ne.s32.totalorder %s136, %s150
    %p152 = scmp.eq.s32.totalorder %s21, 0
    %p153 = por %p151, %p152
    %s155 = sadd.s32 %s154, 1
    %p158 = scmp.eq.s32.totalorder %s15, 1
    %p159 = scmp.ne.s32.totalorder %s154, %s156
    %p160 = scmp.eq.s32.totalorder %s15, 0
    %p161 = por %p159, %p160
    %p162 = scmp.ne.s32.totalorder %s154, %s156
    %p163 = scmp.eq.s32.totalorder %s20, 1
    %p164 = por %p162, %p163
    %p165 = scmp.ne.s32.totalorder %s156, %s157
    %p166 = scmp.eq.s32.totalorder %s20, 0
    %p167 = por %p165, %p166
    %p168 = scmp.ne.s32.totalorder %s156, %s157
    %p169 = scmp.eq.s32.totalorder %s21, 1
    %p170 = por %p168, %p169
    %p172 = scmp.ne.s32.totalorder %s157, %s171
    %p173 = scmp.eq.s32.totalorder %s21, 0
    %p174 = por %p172, %p173
    %s176 = sadd.s32 %s175, 1
    %p179 = scmp.eq.s32.totalorder %s15, 1
    %p180 = scmp.ne.s32.totalorder %s175, %s177
    %p181 = scmp.eq.s32.totalorder %s15, 0
    %p182 = por %p180, %p181
    %p183 = scmp.ne.s32.totalorder %s175, %s177
    %p184 = scmp.eq.s32.totalorder %s20, 1
    %p185 = por %p183, %p184
    %p186 = scmp.ne.s32.totalorder %s177, %s178
    %p187 = scmp.eq.s32.totalorder %s20, 0
    %p188 = por %p186, %p187
    %p189 = scmp.ne.s32.totalorder %s177, %s178
    %p190 = scmp.eq.s32.totalorder %s21, 1
    %p191 = por %p189, %p190
    %p193 = scmp.ne.s32.totalorder %s178, %s192
    %p194 = scmp.eq.s32.totalorder %s21, 0
    %p195 = por %p193, %p194
    %s197 = sadd.s32 %s196, 1
    %p200 = scmp.eq.s32.totalorder %s15, 1
    %p201 = scmp.ne.s32.totalorder %s196, %s198
    %p202 = scmp.eq.s32.totalorder %s15, 0
    %p203 = por %p201, %p202
    %p204 = scmp.ne.s32.totalorder %s196, %s198
    %p205 = scmp.eq.s32.totalorder %s20, 1
    %p206 = por %p204, %p205
    %p207 = scmp.ne.s32.totalorder %s198, %s199
    %p208 = scmp.eq.s32.totalorder %s20, 0
    %p209 = por %p207, %p208
    %p210 = scmp.ne.s32.totalorder %s198, %s199
    %p211 = scmp.eq.s32.totalorder %s21, 1
    %p212 = por %p210, %p211
    %p214 = scmp.ne.s32.totalorder %s199, %s213
    %p215 = scmp.eq.s32.totalorder %s21, 0
    %p216 = por %p214, %p215
    %s217 = ssub.s32 %s15, %s22
    %p218 = scmp.eq.s32.totalorder %s217, 0
    %s220 = sadd.s32 %s219, 1
    %s221 = scalar_select %p218, %s219, %s220
    %p224 = pneg %p218
    %p225 = scmp.eq.s32.totalorder %s15, 1
    %p226 = por %p224, %p225
    %p227 = scmp.ne.s32.totalorder %s219, %s222
    %p228 = scmp.eq.s32.totalorder %s15, 0
    %p229 = por %p227, %p228
    %p230 = scmp.ne.s32.totalorder %s219, %s222
    %p231 = scmp.eq.s32.totalorder %s20, 1
    %p232 = por %p230, %p231
    %p233 = scmp.ne.s32.totalorder %s222, %s223
    %p234 = scmp.eq.s32.totalorder %s20, 0
    %p235 = por %p233, %p234
    %p236 = scmp.ne.s32.totalorder %s222, %s223
    %p237 = scmp.eq.s32.totalorder %s21, 1
    %p238 = por %p236, %p237
    %p240 = scmp.ne.s32.totalorder %s223, %s239
    %p241 = scmp.eq.s32.totalorder %s21, 0
    %p242 = por %p240, %p241
    %p243 = scmp.le.s32.totalorder 1, %s15
    %p244 = scmp.lt.s32.totalorder %s15, 3
    %p245 = pnand %p243, %p244
    %p246 = pneg %p245
    // Predicated region
    $region9: #{unet_output_block.1} parent=5 // pred_check
      _
    $region10: #{unet_output_block.1} parent=5 // pred_check_branch
      %248 = sbr.rel (%p245) target = $region12
    $region11: #{unet_output_block.1} parent=5 // pred_region
      %s249 = ssub.s32 %s15, 1
      // Predicated region
      $region13: #{unet_output_block.1} parent=11 // pred_check
        %p250 = pneg %p62
      $region14: #{unet_output_block.1} parent=11 // pred_check_branch
        %252 = sbr.rel (%p250) target = $region16
      $region15: #{unet_output_block.1} parent=11 // pred_region
        _
      $region16: #{unet_output_block.1} parent=11 // pred_fallthru
        _
      // Predicated region
      $region17: #{unet_output_block.1} parent=11 // pred_check
        %p253 = pneg %p83
      $region18: #{unet_output_block.1} parent=11 // pred_check_branch
        %255 = sbr.rel (%p253) target = $region20
      $region19: #{unet_output_block.1} parent=11 // pred_region
        _
      $region20: #{unet_output_block.1} parent=11 // pred_fallthru
        _
      // Predicated region
      $region21: #{unet_output_block.1} parent=11 // pred_check
        %p256 = pneg %p104
      $region22: #{unet_output_block.1} parent=11 // pred_check_branch
        %258 = sbr.rel (%p256) target = $region24
      $region23: #{unet_output_block.1} parent=11 // pred_region
        _
      $region24: #{unet_output_block.1} parent=11 // pred_fallthru
        _
      // Predicated region
      $region25: #{unet_output_block.1} parent=11 // pred_check
        %p259 = pneg %p125
      $region26: #{unet_output_block.1} parent=11 // pred_check_branch
        %261 = sbr.rel (%p259) target = $region28
      $region27: #{unet_output_block.1} parent=11 // pred_region
        _
      $region28: #{unet_output_block.1} parent=11 // pred_fallthru
        _
      // Predicated region
      $region29: #{unet_output_block.1} parent=11 // pred_check
        %p262 = pneg %p146
      $region30: #{unet_output_block.1} parent=11 // pred_check_branch
        %264 = sbr.rel (%p262) target = $region32
      $region31: #{unet_output_block.1} parent=11 // pred_region
        _
      $region32: #{unet_output_block.1} parent=11 // pred_fallthru
        _
      // Predicated region
      $region33: #{unet_output_block.1} parent=11 // pred_check
        %p265 = pneg %p167
      $region34: #{unet_output_block.1} parent=11 // pred_check_branch
        %267 = sbr.rel (%p265) target = $region36
      $region35: #{unet_output_block.1} parent=11 // pred_region
        _
      $region36: #{unet_output_block.1} parent=11 // pred_fallthru
        _
      // Predicated region
      $region37: #{unet_output_block.1} parent=11 // pred_check
        %p268 = pneg %p188
      $region38: #{unet_output_block.1} parent=11 // pred_check_branch
        %270 = sbr.rel (%p268) target = $region40
      $region39: #{unet_output_block.1} parent=11 // pred_region
        _
      $region40: #{unet_output_block.1} parent=11 // pred_fallthru
        _
      // Predicated region
      $region41: #{unet_output_block.1} parent=11 // pred_check
        %p271 = pneg %p209
      $region42: #{unet_output_block.1} parent=11 // pred_check_branch
        %273 = sbr.rel (%p271) target = $region44
      $region43: #{unet_output_block.1} parent=11 // pred_region
        _
      $region44: #{unet_output_block.1} parent=11 // pred_fallthru
        _
    $region12: #{unet_output_block.1} parent=5 // pred_fallthru
      _
    %p274 = scmp.lt.s32.totalorder %s15, 2
    // Predicated region
    $region45: #{unet_output_block.1} parent=5 // pred_check
      %p275 = pneg %p274
    $region46: #{unet_output_block.1} parent=5 // pred_check_branch
      %277 = sbr.rel (%p275) target = $region48
    $region47: #{unet_output_block.1} parent=5 // pred_region
      // Predicated region
      $region49: #{unet_output_block.1} parent=47 // pred_check
        %p278 = pneg %p35
      $region50: #{unet_output_block.1} parent=47 // pred_check_branch
        %280 = sbr.rel (%p278) target = $region52
      $region51: #{unet_output_block.1} parent=47 // pred_region
        %p281 = scmp.lt.s32.totalorder %s15, 1
        %s282 = scalar_select %p281, %s15, 1
        %s283 = smul.addr %s282, 8
        %s284 = smul.addr %s283, 8
        %s285 = scalar_lea.vmem %s0, %s284
      $region52: #{unet_output_block.1} parent=47 // pred_fallthru
        _
    $region48: #{unet_output_block.1} parent=5 // pred_fallthru
      _
    %p286 = scmp.le.s32.totalorder 1, %s15
    %p287 = scmp.lt.s32.totalorder %s15, 3
    %p288 = pnand %p286, %p287
    %p289 = pneg %p288
    // Predicated region
    $region53: #{unet_output_block.1} parent=5 // pred_check
      _
    $region54: #{unet_output_block.1} parent=5 // pred_check_branch
      %291 = sbr.rel (%p288) target = $region56
    $region55: #{unet_output_block.1} parent=5 // pred_region
      %s292 = ssub.s32 %s15, 1
      %p293 = scmp.lt.s32.totalorder %s20, 1
      %s294 = scalar_select %p293, %s20, 1
      %s295 = smul.addr %s294, 8
      %s296 = smul.addr %s295, 8
      %s297 = scalar_lea.vmem %s0, %s296
      %p298 = pneg %p41
      %p299 = pneg %p38
      %p300 = pneg %p62
      %p301 = pneg %p59
      %p302 = pneg %p83
      %p303 = pneg %p80
      %p304 = pneg %p104
      %p305 = pneg %p101
      %p306 = pneg %p125
      %p307 = pneg %p122
      %p308 = pneg %p146
      %p309 = pneg %p143
      %p310 = pneg %p167
      %p311 = pneg %p164
      %p312 = pneg %p188
      %p313 = pneg %p185
      %p314 = pneg %p209
      %p315 = pneg %p206
      %p316 = pneg %p235
      %p317 = pneg %p232
      %p318 = scmp.lt.s32.totalorder %s20, 1
      %s319 = scalar_select %p318, %s20, 1
      %s320 = smul.addr %s319, 2
      %s321 = smul.addr %s320, 4
      %s322 = scalar_lea.vmem %s9, %s321
      %p323 = scmp.lt.s32.totalorder %s20, 1
      %s324 = scalar_select %p323, %s20, 1
      %s325 = smul.addr %s324, 8
      %s326 = smul.addr %s325, 8
      %s327 = scalar_lea.vmem %s0, %s326
      %p328 = scmp.lt.s32.totalorder %s20, 1
      %s329 = scalar_select %p328, %s20, 1
      %s330 = smul.addr %s329, 2
      %s331 = smul.addr %s330, 4
      %s332 = scalar_lea.vmem %s9, %s331
      %334 = vst [vmem:[#allocation2] sm:$0xff] 0.0
      %335 = vst [vmem:[#allocation2 + $0x8] sm:$0xff] 0.0
      %336 = vst [vmem:[#allocation2 + $0x10] sm:$0xff] 0.0
      %337 = vst [vmem:[#allocation2 + $0x18] sm:$0xff] 0.0
      %338 = vst [vmem:[#allocation2 + $0x20] sm:$0xff] 0.0
      %339 = vst [vmem:[#allocation2 + $0x28] sm:$0xff] 0.0
      %340 = vst [vmem:[#allocation2 + $0x30] sm:$0xff] 0.0
      %341 = vst [vmem:[#allocation2 + $0x38] sm:$0xff] 0.0
      %342 = vst [vmem:[#allocation2 + $0x40] sm:$0xff] 0.0
      %343 = vst [vmem:[#allocation2 + $0x48] sm:$0xff] 0.0
      %344 = vst [vmem:[#allocation2 + $0x50] sm:$0xff] 0.0
      %345 = vst [vmem:[#allocation2 + $0x58] sm:$0xff] 0.0
      %346 = vst [vmem:[#allocation2 + $0x60] sm:$0xff] 0.0
      %347 = vst [vmem:[#allocation2 + $0x68] sm:$0xff] 0.0
      %348 = vst [vmem:[#allocation2 + $0x70] sm:$0xff] 0.0
      %349 = vst [vmem:[#allocation2 + $0x78] sm:$0xff] 0.0
      %v350 = vld [vmem:[%s327] sm:$0xff]
      %v351 = vld [vmem:[%s327 + $0x8] sm:$0xff]
      %v352 = vld [vmem:[%s327 + $0x10] sm:$0xff]
      %v353 = vld [vmem:[%s327 + $0x18] sm:$0xff]
      %v354 = vld [vmem:[%s327 + $0x20] sm:$0xff]
      %v355 = vld [vmem:[%s327 + $0x28] sm:$0xff]
      %v356 = vld [vmem:[%s327 + $0x30] sm:$0xff]
      %v357 = vld [vmem:[%s327 + $0x38] sm:$0xff]
      %358 = vst [vmem:[#allocation2 + $0x8] sm:$0xff] %v350
      %359 = vst [vmem:[#allocation2 + $0x10] sm:$0xff] %v351
      %360 = vst [vmem:[#allocation2 + $0x28] sm:$0xff] %v352
      %361 = vst [vmem:[#allocation2 + $0x30] sm:$0xff] %v353
      %362 = vst [vmem:[#allocation2 + $0x48] sm:$0xff] %v354
      %363 = vst [vmem:[#allocation2 + $0x50] sm:$0xff] %v355
      %364 = vst [vmem:[#allocation2 + $0x68] sm:$0xff] %v356
      %365 = vst [vmem:[#allocation2 + $0x70] sm:$0xff] %v357
      %v366 = vld [vmem:[#allocation2] sm:$0xff]
      %v367 = vld [vmem:[#allocation2 + $0x8] sm:$0xff]
      %v368 = vld [vmem:[#allocation2 + $0x10] sm:$0xff]
      %v369 = vld [vmem:[#allocation2 + $0x20] sm:$0xff]
      %v370 = vld [vmem:[#allocation2 + $0x28] sm:$0xff]
      %v371 = vld [vmem:[#allocation2 + $0x30] sm:$0xff]
      %v372 = vld [vmem:[#allocation2 + $0x40] sm:$0xff]
      %v373 = vld [vmem:[#allocation2 + $0x48] sm:$0xff]
      %v374 = vld [vmem:[#allocation2 + $0x50] sm:$0xff]
      %v375 = vld [vmem:[#allocation2 + $0x60] sm:$0xff]
      %v376 = vld [vmem:[#allocation2 + $0x68] sm:$0xff]
      %v377 = vld [vmem:[#allocation2 + $0x70] sm:$0xff]
      %v378 = vld [vmem:[%s8] ss:$4 sm:$0x3]
      %v380 = vlaneseq
      %v381 = vshrl.u32 %v380, 7
      %v382 = vsub.s32 0, %v381
      %v383 = vrot.slane %v378, %v382
      %v384 = vlaneseq
      %v385 = vshrl.u32 %v384, 7
      %v386 = vsub.s32 1, %v385
      %v387 = vrot.slane %v378, %v386
      %388 = vrot.lane.b32.xlu0 %v383, 111
      %v389 = vpop.permute.xlu0 %388
      %390 = vrot.lane.b32.xlu0 %v387, 111
      %v391 = vpop.permute.xlu0 %390
      %vm392 = vcmask 908288
      %v393 = vsel %vm392, %v389, %v391
      %v397 = vmul.f32 %v366, %v389
      %v398 = vmul.f32 %v367, %v393
      %v399 = vmul.f32 %v368, %v391
      %v400 = vmul.f32 %v369, %v389
      %v401 = vmul.f32 %v370, %v393
      %v402 = vmul.f32 %v371, %v391
      %v403 = vmul.f32 %v372, %v389
      %v404 = vmul.f32 %v373, %v393
      %v405 = vmul.f32 %v374, %v391
      %v406 = vmul.f32 %v375, %v389
      %v407 = vmul.f32 %v376, %v393
      %v408 = vmul.f32 %v377, %v391
      %v409 = vpack.c.bf16 %v400, %v397
      %v410 = vpack.c.bf16 %v401, %v398
      %v411 = vpack.c.bf16 %v402, %v399
      %v412 = vpack.c.bf16 %v406, %v403
      %v413 = vpack.c.bf16 %v407, %v404
      %v414 = vpack.c.bf16 %v408, %v405
      %v421 = vunpack.c.l.b16 %v409
      %v422 = vunpack.c.l.b16 %v410
      %v423 = vunpack.c.l.b16 %v411
      %v424 = vunpack.c.h.b16 %v409
      %v425 = vunpack.c.h.b16 %v410
      %v426 = vunpack.c.h.b16 %v411
      %v427 = vunpack.c.l.b16 %v412
      %v428 = vunpack.c.l.b16 %v413
      %v429 = vunpack.c.l.b16 %v414
      %v430 = vunpack.c.h.b16 %v412
      %v431 = vunpack.c.h.b16 %v413
      %v432 = vunpack.c.h.b16 %v414
      %v433 = vpack.c.b16 %v422, %v421
      %v434 = vpack.c.b16 %v423, %v423
      %v435 = vpack.c.b16 %v425, %v424
      %v436 = vpack.c.b16 %v426, %v426
      %v437 = vpack.c.b16 %v428, %v427
      %v438 = vpack.c.b16 %v429, %v429
      %v439 = vpack.c.b16 %v431, %v430
      %v440 = vpack.c.b16 %v432, %v432
      %441 = vrot.lane.b32.xlu0 %v433, 17
      %v442 = vpop.permute.xlu0 %441
      %443 = vrot.lane.b32.xlu0 %v434, 17
      %v444 = vpop.permute.xlu0 %443
      %445 = vrot.lane.b32.xlu0 %v435, 17
      %v446 = vpop.permute.xlu0 %445
      %447 = vrot.lane.b32.xlu0 %v436, 17
      %v448 = vpop.permute.xlu0 %447
      %449 = vrot.lane.b32.xlu0 %v437, 17
      %v450 = vpop.permute.xlu0 %449
      %451 = vrot.lane.b32.xlu0 %v438, 17
      %v452 = vpop.permute.xlu0 %451
      %453 = vrot.lane.b32.xlu0 %v439, 17
      %v454 = vpop.permute.xlu0 %453
      %455 = vrot.lane.b32.xlu0 %v440, 17
      %v456 = vpop.permute.xlu0 %455
      %v457 = vrot.slane %v442, 4
      %v458 = vrot.slane %v444, 4
      %v459 = vrot.slane %v446, 4
      %v460 = vrot.slane %v448, 4
      %v461 = vrot.slane %v450, 4
      %v462 = vrot.slane %v452, 4
      %v463 = vrot.slane %v454, 4
      %v464 = vrot.slane %v456, 4
      %vm465 = vcmask 1043456
      %v466 = vsel %vm465, %v457, %v458
      %vm467 = vcmask 138240
      %v468 = vsel %vm467, %v442, %v466
      %v469 = vsel %vm465, %v459, %v460
      %v470 = vsel %vm467, %v446, %v469
      %v471 = vsel %vm465, %v461, %v462
      %v472 = vsel %vm467, %v450, %v471
      %v473 = vsel %vm465, %v463, %v464
      %v474 = vsel %vm467, %v454, %v473
      %479 = vst [vmem:[#allocation3] sm:$0xff] %v468
      %480 = vst [vmem:[#allocation3 + $0x8] sm:$0xff] %v470
      %481 = vst [vmem:[#allocation3 + $0x10] sm:$0xff] %v472
      %482 = vst [vmem:[#allocation3 + $0x18] sm:$0xff] %v474
      %v483 = vld [vmem:[#allocation2] sm:$0xff]
      %v484 = vld [vmem:[#allocation2 + $0x8] sm:$0xff]
      %v485 = vld [vmem:[#allocation2 + $0x10] sm:$0xff]
      %v486 = vld [vmem:[#allocation2 + $0x20] sm:$0xff]
      %v487 = vld [vmem:[#allocation2 + $0x28] sm:$0xff]
      %v488 = vld [vmem:[#allocation2 + $0x30] sm:$0xff]
      %v489 = vld [vmem:[#allocation2 + $0x40] sm:$0xff]
      %v490 = vld [vmem:[#allocation2 + $0x48] sm:$0xff]
      %v491 = vld [vmem:[#allocation2 + $0x50] sm:$0xff]
      %v492 = vld [vmem:[#allocation2 + $0x60] sm:$0xff]
      %v493 = vld [vmem:[#allocation2 + $0x68] sm:$0xff]
      %v494 = vld [vmem:[#allocation2 + $0x70] sm:$0xff]
      %v495 = vpack.c.bf16 %v486, %v483
      %v496 = vpack.c.bf16 %v487, %v484
      %v497 = vpack.c.bf16 %v488, %v485
      %v498 = vpack.c.bf16 %v492, %v489
      %v499 = vpack.c.bf16 %v493, %v490
      %v500 = vpack.c.bf16 %v494, %v491
      %v507 = vunpack.c.l.b16 %v495
      %v508 = vunpack.c.l.b16 %v496
      %v509 = vunpack.c.l.b16 %v497
      %v510 = vunpack.c.h.b16 %v495
      %v511 = vunpack.c.h.b16 %v496
      %v512 = vunpack.c.h.b16 %v497
      %v513 = vunpack.c.l.b16 %v498
      %v514 = vunpack.c.l.b16 %v499
      %v515 = vunpack.c.l.b16 %v500
      %v516 = vunpack.c.h.b16 %v498
      %v517 = vunpack.c.h.b16 %v499
      %v518 = vunpack.c.h.b16 %v500
      %v519 = vpack.c.b16 %v508, %v507
      %v520 = vpack.c.b16 %v509, %v509
      %v521 = vpack.c.b16 %v511, %v510
      %v522 = vpack.c.b16 %v512, %v512
      %v523 = vpack.c.b16 %v514, %v513
      %v524 = vpack.c.b16 %v515, %v515
      %v525 = vpack.c.b16 %v517, %v516
      %v526 = vpack.c.b16 %v518, %v518
      %527 = vrot.lane.b32.xlu0 %v519, 16
      %v528 = vpop.permute.xlu0 %527
      %529 = vrot.lane.b32.xlu0 %v520, 16
      %v530 = vpop.permute.xlu0 %529
      %531 = vrot.lane.b32.xlu0 %v521, 16
      %v532 = vpop.permute.xlu0 %531
      %533 = vrot.lane.b32.xlu0 %v522, 16
      %v534 = vpop.permute.xlu0 %533
      %535 = vrot.lane.b32.xlu0 %v523, 16
      %v536 = vpop.permute.xlu0 %535
      %537 = vrot.lane.b32.xlu0 %v524, 16
      %v538 = vpop.permute.xlu0 %537
      %539 = vrot.lane.b32.xlu0 %v525, 16
      %v540 = vpop.permute.xlu0 %539
      %541 = vrot.lane.b32.xlu0 %v526, 16
      %v542 = vpop.permute.xlu0 %541
      %v543 = vrot.slane %v528, 4
      %v544 = vrot.slane %v530, 4
      %v545 = vrot.slane %v532, 4
      %v546 = vrot.slane %v534, 4
      %v547 = vrot.slane %v536, 4
      %v548 = vrot.slane %v538, 4
      %v549 = vrot.slane %v540, 4
      %v550 = vrot.slane %v542, 4
      %v551 = vsel %vm465, %v543, %v544
      %vm552 = vcmask 130048
      %v553 = vsel %vm552, %v528, %v551
      %v554 = vsel %vm465, %v545, %v546
      %v555 = vsel %vm552, %v532, %v554
      %v556 = vsel %vm465, %v547, %v548
      %v557 = vsel %vm552, %v536, %v556
      %v558 = vsel %vm465, %v549, %v550
      %v559 = vsel %vm552, %v540, %v558
      %564 = vst [vmem:[#allocation3 + $0x20] sm:$0xff] %v553
      %565 = vst [vmem:[#allocation3 + $0x28] sm:$0xff] %v555
      %566 = vst [vmem:[#allocation3 + $0x30] sm:$0xff] %v557
      %567 = vst [vmem:[#allocation3 + $0x38] sm:$0xff] %v559
      %v568 = vld [vmem:[#allocation2] sm:$0xff]
      %v569 = vld [vmem:[#allocation2 + $0x8] sm:$0xff]
      %v570 = vld [vmem:[#allocation2 + $0x10] sm:$0xff]
      %v571 = vld [vmem:[#allocation2 + $0x20] sm:$0xff]
      %v572 = vld [vmem:[#allocation2 + $0x28] sm:$0xff]
      %v573 = vld [vmem:[#allocation2 + $0x30] sm:$0xff]
      %v574 = vld [vmem:[#allocation2 + $0x40] sm:$0xff]
      %v575 = vld [vmem:[#allocation2 + $0x48] sm:$0xff]
      %v576 = vld [vmem:[#allocation2 + $0x50] sm:$0xff]
      %v577 = vld [vmem:[#allocation2 + $0x60] sm:$0xff]
      %v578 = vld [vmem:[#allocation2 + $0x68] sm:$0xff]
      %v579 = vld [vmem:[#allocation2 + $0x70] sm:$0xff]
      %s580 = scalar_lea.vmem %s8, 2
      %v581 = vld [vmem:[%s580] ss:$4 sm:$0x3]
      %v583 = vlaneseq
      %v584 = vshrl.u32 %v583, 7
      %v585 = vsub.s32 0, %v584
      %v586 = vrot.slane %v581, %v585
      %v587 = vlaneseq
      %v588 = vshrl.u32 %v587, 7
      %v589 = vsub.s32 1, %v588
      %v590 = vrot.slane %v581, %v589
      %591 = vrot.lane.b32.xlu0 %v586, 113
      %v592 = vpop.permute.xlu0 %591
      %593 = vrot.lane.b32.xlu0 %v590, 113
      %v594 = vpop.permute.xlu0 %593
      %vm595 = vcmask 924672
      %v596 = vsel %vm595, %v592, %v594
      %v600 = vmul.f32 %v568, %v592
      %v601 = vmul.f32 %v569, %v596
      %v602 = vmul.f32 %v570, %v594
      %v603 = vmul.f32 %v571, %v592
      %v604 = vmul.f32 %v572, %v596
      %v605 = vmul.f32 %v573, %v594
      %v606 = vmul.f32 %v574, %v592
      %v607 = vmul.f32 %v575, %v596
      %v608 = vmul.f32 %v576, %v594
      %v609 = vmul.f32 %v577, %v592
      %v610 = vmul.f32 %v578, %v596
      %v611 = vmul.f32 %v579, %v594
      %v612 = vpack.c.bf16 %v603, %v600
      %v613 = vpack.c.bf16 %v604, %v601
      %v614 = vpack.c.bf16 %v605, %v602
      %v615 = vpack.c.bf16 %v609, %v606
      %v616 = vpack.c.bf16 %v610, %v607
      %v617 = vpack.c.bf16 %v611, %v608
      %v624 = vunpack.c.l.b16 %v612
      %v625 = vunpack.c.l.b16 %v613
      %v626 = vunpack.c.l.b16 %v614
      %v627 = vunpack.c.h.b16 %v612
      %v628 = vunpack.c.h.b16 %v613
      %v629 = vunpack.c.h.b16 %v614
      %v630 = vunpack.c.l.b16 %v615
      %v631 = vunpack.c.l.b16 %v616
      %v632 = vunpack.c.l.b16 %v617
      %v633 = vunpack.c.h.b16 %v615
      %v634 = vunpack.c.h.b16 %v616
      %v635 = vunpack.c.h.b16 %v617
      %v636 = vpack.c.b16 %v625, %v624
      %v637 = vpack.c.b16 %v626, %v626
      %v638 = vpack.c.b16 %v628, %v627
      %v639 = vpack.c.b16 %v629, %v629
      %v640 = vpack.c.b16 %v631, %v630
      %v641 = vpack.c.b16 %v632, %v632
      %v642 = vpack.c.b16 %v634, %v633
      %v643 = vpack.c.b16 %v635, %v635
      %644 = vrot.lane.b32.xlu0 %v636, 15
      %v645 = vpop.permute.xlu0 %644
      %646 = vrot.lane.b32.xlu0 %v637, 15
      %v647 = vpop.permute.xlu0 %646
      %648 = vrot.lane.b32.xlu0 %v638, 15
      %v649 = vpop.permute.xlu0 %648
      %650 = vrot.lane.b32.xlu0 %v639, 15
      %v651 = vpop.permute.xlu0 %650
      %652 = vrot.lane.b32.xlu0 %v640, 15
      %v653 = vpop.permute.xlu0 %652
      %654 = vrot.lane.b32.xlu0 %v641, 15
      %v655 = vpop.permute.xlu0 %654
      %656 = vrot.lane.b32.xlu0 %v642, 15
      %v657 = vpop.permute.xlu0 %656
      %658 = vrot.lane.b32.xlu0 %v643, 15
      %v659 = vpop.permute.xlu0 %658
      %v660 = vrot.slane %v645, 4
      %v661 = vrot.slane %v647, 4
      %v662 = vrot.slane %v649, 4
      %v663 = vrot.slane %v651, 4
      %v664 = vrot.slane %v653, 4
      %v665 = vrot.slane %v655, 4
      %v666 = vrot.slane %v657, 4
      %v667 = vrot.slane %v659, 4
      %v668 = vsel %vm465, %v660, %v661
      %vm669 = vcmask 121856
      %v670 = vsel %vm669, %v645, %v668
      %v671 = vsel %vm465, %v662, %v663
      %v672 = vsel %vm669, %v649, %v671
      %v673 = vsel %vm465, %v664, %v665
      %v674 = vsel %vm669, %v653, %v673
      %v675 = vsel %vm465, %v666, %v667
      %v676 = vsel %vm669, %v657, %v675
      %681 = vst [vmem:[#allocation3 + $0x40] sm:$0xff] %v670
      %682 = vst [vmem:[#allocation3 + $0x48] sm:$0xff] %v672
      %683 = vst [vmem:[#allocation3 + $0x50] sm:$0xff] %v674
      %684 = vst [vmem:[#allocation3 + $0x58] sm:$0xff] %v676
      %v685 = vld [vmem:[#allocation2] sm:$0xff]
      %v686 = vld [vmem:[#allocation2 + $0x8] sm:$0xff]
      %v687 = vld [vmem:[#allocation2 + $0x10] sm:$0xff]
      %v688 = vld [vmem:[#allocation2 + $0x20] sm:$0xff]
      %v689 = vld [vmem:[#allocation2 + $0x28] sm:$0xff]
      %v690 = vld [vmem:[#allocation2 + $0x30] sm:$0xff]
      %v691 = vld [vmem:[#allocation2 + $0x40] sm:$0xff]
      %v692 = vld [vmem:[#allocation2 + $0x48] sm:$0xff]
      %v693 = vld [vmem:[#allocation2 + $0x50] sm:$0xff]
      %v694 = vld [vmem:[#allocation2 + $0x60] sm:$0xff]
      %v695 = vld [vmem:[#allocation2 + $0x68] sm:$0xff]
      %v696 = vld [vmem:[#allocation2 + $0x70] sm:$0xff]
      %v697 = vld [vmem:[%s8] ss:$4 sm:$0x3]
      %v699 = vlaneseq
      %v700 = vshrl.u32 %v699, 7
      %v701 = vsub.s32 0, %v700
      %v702 = vrot.slane %v697, %v701
      %v703 = vlaneseq
      %v704 = vshrl.u32 %v703, 7
      %v705 = vsub.s32 1, %v704
      %v706 = vrot.slane %v697, %v705
      %707 = vrot.lane.b32.xlu0 %v702, 127
      %v708 = vpop.permute.xlu0 %707
      %709 = vrot.lane.b32.xlu0 %v706, 127
      %v710 = vpop.permute.xlu0 %709
      %vm711 = vcmask 1039360
      %v712 = vsel %vm711, %v708, %v710
      %v716 = vmul.f32 %v685, %v708
      %v717 = vmul.f32 %v686, %v712
      %v718 = vmul.f32 %v687, %v710
      %v719 = vmul.f32 %v688, %v708
      %v720 = vmul.f32 %v689, %v712
      %v721 = vmul.f32 %v690, %v710
      %v722 = vmul.f32 %v691, %v708
      %v723 = vmul.f32 %v692, %v712
      %v724 = vmul.f32 %v693, %v710
      %v725 = vmul.f32 %v694, %v708
      %v726 = vmul.f32 %v695, %v712
      %v727 = vmul.f32 %v696, %v710
      %v728 = vpack.c.bf16 %v719, %v716
      %v729 = vpack.c.bf16 %v720, %v717
      %v730 = vpack.c.bf16 %v721, %v718
      %v731 = vpack.c.bf16 %v725, %v722
      %v732 = vpack.c.bf16 %v726, %v723
      %v733 = vpack.c.bf16 %v727, %v724
      %v740 = vunpack.c.l.b16 %v728
      %v741 = vunpack.c.l.b16 %v729
      %v742 = vunpack.c.l.b16 %v730
      %v743 = vunpack.c.h.b16 %v728
      %v744 = vunpack.c.h.b16 %v729
      %v745 = vunpack.c.h.b16 %v730
      %v746 = vunpack.c.l.b16 %v731
      %v747 = vunpack.c.l.b16 %v732
      %v748 = vunpack.c.l.b16 %v733
      %v749 = vunpack.c.h.b16 %v731
      %v750 = vunpack.c.h.b16 %v732
      %v751 = vunpack.c.h.b16 %v733
      %v752 = vpack.c.b16 %v741, %v740
      %v753 = vpack.c.b16 %v742, %v742
      %v754 = vpack.c.b16 %v744, %v743
      %v755 = vpack.c.b16 %v745, %v745
      %v756 = vpack.c.b16 %v747, %v746
      %v757 = vpack.c.b16 %v748, %v748
      %v758 = vpack.c.b16 %v750, %v749
      %v759 = vpack.c.b16 %v751, %v751
      %760 = vrot.lane.b32.xlu0 %v752, 1
      %v761 = vpop.permute.xlu0 %760
      %762 = vrot.lane.b32.xlu0 %v753, 1
      %v763 = vpop.permute.xlu0 %762
      %764 = vrot.lane.b32.xlu0 %v754, 1
      %v765 = vpop.permute.xlu0 %764
      %766 = vrot.lane.b32.xlu0 %v755, 1
      %v767 = vpop.permute.xlu0 %766
      %768 = vrot.lane.b32.xlu0 %v756, 1
      %v769 = vpop.permute.xlu0 %768
      %770 = vrot.lane.b32.xlu0 %v757, 1
      %v771 = vpop.permute.xlu0 %770
      %772 = vrot.lane.b32.xlu0 %v758, 1
      %v773 = vpop.permute.xlu0 %772
      %774 = vrot.lane.b32.xlu0 %v759, 1
      %v775 = vpop.permute.xlu0 %774
      %v776 = vrot.slane %v761, 4
      %v777 = vrot.slane %v763, 4
      %v778 = vrot.slane %v765, 4
      %v779 = vrot.slane %v767, 4
      %v780 = vrot.slane %v769, 4
      %v781 = vrot.slane %v771, 4
      %v782 = vrot.slane %v773, 4
      %v783 = vrot.slane %v775, 4
      %v784 = vsel %vm465, %v776, %v777
      %vm785 = vcmask 7168
      %v786 = vsel %vm785, %v761, %v784
      %v787 = vsel %vm465, %v778, %v779
      %v788 = vsel %vm785, %v765, %v787
      %v789 = vsel %vm465, %v780, %v781
      %v790 = vsel %vm785, %v769, %v789
      %v791 = vsel %vm465, %v782, %v783
      %v792 = vsel %vm785, %v773, %v791
      %797 = vst [vmem:[#allocation3 + $0x60] sm:$0xff] %v786
      %798 = vst [vmem:[#allocation3 + $0x68] sm:$0xff] %v788
      %799 = vst [vmem:[#allocation3 + $0x70] sm:$0xff] %v790
      %800 = vst [vmem:[#allocation3 + $0x78] sm:$0xff] %v792
      %v801 = vld [vmem:[#allocation2 + $0x8] sm:$0xff]
      %v802 = vld [vmem:[#allocation2 + $0x10] sm:$0xff]
      %v803 = vld [vmem:[#allocation2 + $0x28] sm:$0xff]
      %v804 = vld [vmem:[#allocation2 + $0x30] sm:$0xff]
      %v805 = vld [vmem:[#allocation2 + $0x48] sm:$0xff]
      %v806 = vld [vmem:[#allocation2 + $0x50] sm:$0xff]
      %v807 = vld [vmem:[#allocation2 + $0x68] sm:$0xff]
      %v808 = vld [vmem:[#allocation2 + $0x70] sm:$0xff]
      %v809 = vpack.c.bf16 %v803, %v801
      %v810 = vpack.c.bf16 %v804, %v802
      %v811 = vpack.c.bf16 %v807, %v805
      %v812 = vpack.c.bf16 %v808, %v806
      %v817 = vunpack.c.l.b16 %v809
      %v818 = vunpack.c.l.b16 %v810
      %v819 = vunpack.c.h.b16 %v809
      %v820 = vunpack.c.h.b16 %v810
      %v821 = vunpack.c.l.b16 %v811
      %v822 = vunpack.c.l.b16 %v812
      %v823 = vunpack.c.h.b16 %v811
      %v824 = vunpack.c.h.b16 %v812
      %v825 = vpack.c.b16 %v818, %v817
      %v826 = vpack.c.b16 %v820, %v819
      %v827 = vpack.c.b16 %v822, %v821
      %v828 = vpack.c.b16 %v824, %v823
      %833 = vst [vmem:[#allocation3 + $0x80] sm:$0xff] %v825
      %834 = vst [vmem:[#allocation3 + $0x88] sm:$0xff] %v826
      %835 = vst [vmem:[#allocation3 + $0x90] sm:$0xff] %v827
      %836 = vst [vmem:[#allocation3 + $0x98] sm:$0xff] %v828
      %v837 = vld [vmem:[#allocation2 + $0x8] sm:$0xff]
      %v838 = vld [vmem:[#allocation2 + $0x10] sm:$0xff]
      %v839 = vld [vmem:[#allocation2 + $0x18] sm:$0xff]
      %v840 = vld [vmem:[#allocation2 + $0x28] sm:$0xff]
      %v841 = vld [vmem:[#allocation2 + $0x30] sm:$0xff]
      %v842 = vld [vmem:[#allocation2 + $0x38] sm:$0xff]
      %v843 = vld [vmem:[#allocation2 + $0x48] sm:$0xff]
      %v844 = vld [vmem:[#allocation2 + $0x50] sm:$0xff]
      %v845 = vld [vmem:[#allocation2 + $0x58] sm:$0xff]
      %v846 = vld [vmem:[#allocation2 + $0x68] sm:$0xff]
      %v847 = vld [vmem:[#allocation2 + $0x70] sm:$0xff]
      %v848 = vld [vmem:[#allocation2 + $0x78] sm:$0xff]
      %v849 = vld [vmem:[%s580] ss:$4 sm:$0x3]
      %v851 = vlaneseq
      %v852 = vshrl.u32 %v851, 7
      %v853 = vsub.s32 0, %v852
      %v854 = vrot.slane %v849, %v853
      %v855 = vlaneseq
      %v856 = vshrl.u32 %v855, 7
      %v857 = vsub.s32 1, %v856
      %v858 = vrot.slane %v849, %v857
      %859 = vrot.lane.b32.xlu0 %v854, 1
      %v860 = vpop.permute.xlu0 %859
      %861 = vrot.lane.b32.xlu0 %v858, 1
      %v862 = vpop.permute.xlu0 %861
      %vm863 = vcmask 7168
      %v864 = vsel %vm863, %v860, %v862
      %v868 = vmul.f32 %v837, %v860
      %v869 = vmul.f32 %v838, %v864
      %v870 = vmul.f32 %v839, %v862
      %v871 = vmul.f32 %v840, %v860
      %v872 = vmul.f32 %v841, %v864
      %v873 = vmul.f32 %v842, %v862
      %v874 = vmul.f32 %v843, %v860
      %v875 = vmul.f32 %v844, %v864
      %v876 = vmul.f32 %v845, %v862
      %v877 = vmul.f32 %v846, %v860
      %v878 = vmul.f32 %v847, %v864
      %v879 = vmul.f32 %v848, %v862
      %v880 = vpack.c.bf16 %v871, %v868
      %v881 = vpack.c.bf16 %v872, %v869
      %v882 = vpack.c.bf16 %v873, %v870
      %v883 = vpack.c.bf16 %v877, %v874
      %v884 = vpack.c.bf16 %v878, %v875
      %v885 = vpack.c.bf16 %v879, %v876
      %v892 = vunpack.c.l.b16 %v880
      %v893 = vunpack.c.l.b16 %v881
      %v894 = vunpack.c.l.b16 %v882
      %v895 = vunpack.c.h.b16 %v880
      %v896 = vunpack.c.h.b16 %v881
      %v897 = vunpack.c.h.b16 %v882
      %v898 = vunpack.c.l.b16 %v883
      %v899 = vunpack.c.l.b16 %v884
      %v900 = vunpack.c.l.b16 %v885
      %v901 = vunpack.c.h.b16 %v883
      %v902 = vunpack.c.h.b16 %v884
      %v903 = vunpack.c.h.b16 %v885
      %v904 = vpack.c.b16 %v893, %v892
      %v905 = vpack.c.b16 %v894, %v894
      %v906 = vpack.c.b16 %v896, %v895
      %v907 = vpack.c.b16 %v897, %v897
      %v908 = vpack.c.b16 %v899, %v898
      %v909 = vpack.c.b16 %v900, %v900
      %v910 = vpack.c.b16 %v902, %v901
      %v911 = vpack.c.b16 %v903, %v903
      %912 = vrot.lane.b32.xlu0 %v904, 127
      %v913 = vpop.permute.xlu0 %912
      %914 = vrot.lane.b32.xlu0 %v905, 127
      %v915 = vpop.permute.xlu0 %914
      %916 = vrot.lane.b32.xlu0 %v906, 127
      %v917 = vpop.permute.xlu0 %916
      %918 = vrot.lane.b32.xlu0 %v907, 127
      %v919 = vpop.permute.xlu0 %918
      %920 = vrot.lane.b32.xlu0 %v908, 127
      %v921 = vpop.permute.xlu0 %920
      %922 = vrot.lane.b32.xlu0 %v909, 127
      %v923 = vpop.permute.xlu0 %922
      %924 = vrot.lane.b32.xlu0 %v910, 127
      %v925 = vpop.permute.xlu0 %924
      %926 = vrot.lane.b32.xlu0 %v911, 127
      %v927 = vpop.permute.xlu0 %926
      %v928 = vrot.slane %v913, 4
      %v929 = vrot.slane %v915, 4
      %v930 = vrot.slane %v917, 4
      %v931 = vrot.slane %v919, 4
      %v932 = vrot.slane %v921, 4
      %v933 = vrot.slane %v923, 4
      %v934 = vrot.slane %v925, 4
      %v935 = vrot.slane %v927, 4
      %v936 = vsel %vm465, %v928, %v929
      %vm937 = vcmask 1039360
      %v938 = vsel %vm937, %v913, %v936
      %v939 = vsel %vm465, %v930, %v931
      %v940 = vsel %vm937, %v917, %v939
      %v941 = vsel %vm465, %v932, %v933
      %v942 = vsel %vm937, %v921, %v941
      %v943 = vsel %vm465, %v934, %v935
      %v944 = vsel %vm937, %v925, %v943
      %949 = vst [vmem:[#allocation3 + $0xa0] sm:$0xff] %v938
      %950 = vst [vmem:[#allocation3 + $0xa8] sm:$0xff] %v940
      %951 = vst [vmem:[#allocation3 + $0xb0] sm:$0xff] %v942
      %952 = vst [vmem:[#allocation3 + $0xb8] sm:$0xff] %v944
      %v953 = vld [vmem:[#allocation2 + $0x8] sm:$0xff]
      %v954 = vld [vmem:[#allocation2 + $0x10] sm:$0xff]
      %v955 = vld [vmem:[#allocation2 + $0x18] sm:$0xff]
      %v956 = vld [vmem:[#allocation2 + $0x28] sm:$0xff]
      %v957 = vld [vmem:[#allocation2 + $0x30] sm:$0xff]
      %v958 = vld [vmem:[#allocation2 + $0x38] sm:$0xff]
      %v959 = vld [vmem:[#allocation2 + $0x48] sm:$0xff]
      %v960 = vld [vmem:[#allocation2 + $0x50] sm:$0xff]
      %v961 = vld [vmem:[#allocation2 + $0x58] sm:$0xff]
      %v962 = vld [vmem:[#allocation2 + $0x68] sm:$0xff]
      %v963 = vld [vmem:[#allocation2 + $0x70] sm:$0xff]
      %v964 = vld [vmem:[#allocation2 + $0x78] sm:$0xff]
      %v965 = vld [vmem:[%s8] ss:$4 sm:$0x3]
      %v967 = vlaneseq
      %v968 = vshrl.u32 %v967, 7
      %v969 = vsub.s32 0, %v968
      %v970 = vrot.slane %v965, %v969
      %v971 = vlaneseq
      %v972 = vshrl.u32 %v971, 7
      %v973 = vsub.s32 1, %v972
      %v974 = vrot.slane %v965, %v973
      %975 = vrot.lane.b32.xlu0 %v970, 15
      %v976 = vpop.permute.xlu0 %975
      %977 = vrot.lane.b32.xlu0 %v974, 15
      %v978 = vpop.permute.xlu0 %977
      %vm979 = vcmask 121856
      %v980 = vsel %vm979, %v976, %v978
      %v984 = vmul.f32 %v953, %v976
      %v985 = vmul.f32 %v954, %v980
      %v986 = vmul.f32 %v955, %v978
      %v987 = vmul.f32 %v956, %v976
      %v988 = vmul.f32 %v957, %v980
      %v989 = vmul.f32 %v958, %v978
      %v990 = vmul.f32 %v959, %v976
      %v991 = vmul.f32 %v960, %v980
      %v992 = vmul.f32 %v961, %v978
      %v993 = vmul.f32 %v962, %v976
      %v994 = vmul.f32 %v963, %v980
      %v995 = vmul.f32 %v964, %v978
      %v996 = vpack.c.bf16 %v987, %v984
      %v997 = vpack.c.bf16 %v988, %v985
      %v998 = vpack.c.bf16 %v989, %v986
      %v999 = vpack.c.bf16 %v993, %v990
      %v1000 = vpack.c.bf16 %v994, %v991
      %v1001 = vpack.c.bf16 %v995, %v992
      %v1008 = vunpack.c.l.b16 %v996
      %v1009 = vunpack.c.l.b16 %v997
      %v1010 = vunpack.c.l.b16 %v998
      %v1011 = vunpack.c.h.b16 %v996
      %v1012 = vunpack.c.h.b16 %v997
      %v1013 = vunpack.c.h.b16 %v998
      %v1014 = vunpack.c.l.b16 %v999
      %v1015 = vunpack.c.l.b16 %v1000
      %v1016 = vunpack.c.l.b16 %v1001
      %v1017 = vunpack.c.h.b16 %v999
      %v1018 = vunpack.c.h.b16 %v1000
      %v1019 = vunpack.c.h.b16 %v1001
      %v1020 = vpack.c.b16 %v1009, %v1008
      %v1021 = vpack.c.b16 %v1010, %v1010
      %v1022 = vpack.c.b16 %v1012, %v1011
      %v1023 = vpack.c.b16 %v1013, %v1013
      %v1024 = vpack.c.b16 %v1015, %v1014
      %v1025 = vpack.c.b16 %v1016, %v1016
      %v1026 = vpack.c.b16 %v1018, %v1017
      %v1027 = vpack.c.b16 %v1019, %v1019
      %1028 = vrot.lane.b32.xlu0 %v1020, 113
      %v1029 = vpop.permute.xlu0 %1028
      %1030 = vrot.lane.b32.xlu0 %v1021, 113
      %v1031 = vpop.permute.xlu0 %1030
      %1032 = vrot.lane.b32.xlu0 %v1022, 113
      %v1033 = vpop.permute.xlu0 %1032
      %1034 = vrot.lane.b32.xlu0 %v1023, 113
      %v1035 = vpop.permute.xlu0 %1034
      %1036 = vrot.lane.b32.xlu0 %v1024, 113
      %v1037 = vpop.permute.xlu0 %1036
      %1038 = vrot.lane.b32.xlu0 %v1025, 113
      %v1039 = vpop.permute.xlu0 %1038
      %1040 = vrot.lane.b32.xlu0 %v1026, 113
      %v1041 = vpop.permute.xlu0 %1040
      %1042 = vrot.lane.b32.xlu0 %v1027, 113
      %v1043 = vpop.permute.xlu0 %1042
      %v1044 = vrot.slane %v1029, 4
      %v1045 = vrot.slane %v1031, 4
      %v1046 = vrot.slane %v1033, 4
      %v1047 = vrot.slane %v1035, 4
      %v1048 = vrot.slane %v1037, 4
      %v1049 = vrot.slane %v1039, 4
      %v1050 = vrot.slane %v1041, 4
      %v1051 = vrot.slane %v1043, 4
      %v1052 = vsel %vm465, %v1044, %v1045
      %vm1053 = vcmask 924672
      %v1054 = vsel %vm1053, %v1029, %v1052
      %v1055 = vsel %vm465, %v1046, %v1047
      %v1056 = vsel %vm1053, %v1033, %v1055
      %v1057 = vsel %vm465, %v1048, %v1049
      %v1058 = vsel %vm1053, %v1037, %v1057
      %v1059 = vsel %vm465, %v1050, %v1051
      %v1060 = vsel %vm1053, %v1041, %v1059
      %1065 = vst [vmem:[#allocation3 + $0xc0] sm:$0xff] %v1054
      %1066 = vst [vmem:[#allocation3 + $0xc8] sm:$0xff] %v1056
      %1067 = vst [vmem:[#allocation3 + $0xd0] sm:$0xff] %v1058
      %1068 = vst [vmem:[#allocation3 + $0xd8] sm:$0xff] %v1060
      %v1069 = vld [vmem:[#allocation2 + $0x8] sm:$0xff]
      %v1070 = vld [vmem:[#allocation2 + $0x10] sm:$0xff]
      %v1071 = vld [vmem:[#allocation2 + $0x18] sm:$0xff]
      %v1072 = vld [vmem:[#allocation2 + $0x28] sm:$0xff]
      %v1073 = vld [vmem:[#allocation2 + $0x30] sm:$0xff]
      %v1074 = vld [vmem:[#allocation2 + $0x38] sm:$0xff]
      %v1075 = vld [vmem:[#allocation2 + $0x48] sm:$0xff]
      %v1076 = vld [vmem:[#allocation2 + $0x50] sm:$0xff]
      %v1077 = vld [vmem:[#allocation2 + $0x58] sm:$0xff]
      %v1078 = vld [vmem:[#allocation2 + $0x68] sm:$0xff]
      %v1079 = vld [vmem:[#allocation2 + $0x70] sm:$0xff]
      %v1080 = vld [vmem:[#allocation2 + $0x78] sm:$0xff]
      %v1081 = vpack.c.bf16 %v1072, %v1069
      %v1082 = vpack.c.bf16 %v1073, %v1070
      %v1083 = vpack.c.bf16 %v1074, %v1071
      %v1084 = vpack.c.bf16 %v1078, %v1075
      %v1085 = vpack.c.bf16 %v1079, %v1076
      %v1086 = vpack.c.bf16 %v1080, %v1077
      %v1093 = vunpack.c.l.b16 %v1081
      %v1094 = vunpack.c.l.b16 %v1082
      %v1095 = vunpack.c.l.b16 %v1083
      %v1096 = vunpack.c.h.b16 %v1081
      %v1097 = vunpack.c.h.b16 %v1082
      %v1098 = vunpack.c.h.b16 %v1083
      %v1099 = vunpack.c.l.b16 %v1084
      %v1100 = vunpack.c.l.b16 %v1085
      %v1101 = vunpack.c.l.b16 %v1086
      %v1102 = vunpack.c.h.b16 %v1084
      %v1103 = vunpack.c.h.b16 %v1085
      %v1104 = vunpack.c.h.b16 %v1086
      %v1105 = vpack.c.b16 %v1094, %v1093
      %v1106 = vpack.c.b16 %v1095, %v1095
      %v1107 = vpack.c.b16 %v1097, %v1096
      %v1108 = vpack.c.b16 %v1098, %v1098
      %v1109 = vpack.c.b16 %v1100, %v1099
      %v1110 = vpack.c.b16 %v1101, %v1101
      %v1111 = vpack.c.b16 %v1103, %v1102
      %v1112 = vpack.c.b16 %v1104, %v1104
      %1113 = vrot.lane.b32.xlu0 %v1105, 112
      %v1114 = vpop.permute.xlu0 %1113
      %1115 = vrot.lane.b32.xlu0 %v1106, 112
      %v1116 = vpop.permute.xlu0 %1115
      %1117 = vrot.lane.b32.xlu0 %v1107, 112
      %v1118 = vpop.permute.xlu0 %1117
      %1119 = vrot.lane.b32.xlu0 %v1108, 112
      %v1120 = vpop.permute.xlu0 %1119
      %1121 = vrot.lane.b32.xlu0 %v1109, 112
      %v1122 = vpop.permute.xlu0 %1121
      %1123 = vrot.lane.b32.xlu0 %v1110, 112
      %v1124 = vpop.permute.xlu0 %1123
      %1125 = vrot.lane.b32.xlu0 %v1111, 112
      %v1126 = vpop.permute.xlu0 %1125
      %1127 = vrot.lane.b32.xlu0 %v1112, 112
      %v1128 = vpop.permute.xlu0 %1127
      %v1129 = vrot.slane %v1114, 4
      %v1130 = vrot.slane %v1116, 4
      %v1131 = vrot.slane %v1118, 4
      %v1132 = vrot.slane %v1120, 4
      %v1133 = vrot.slane %v1122, 4
      %v1134 = vrot.slane %v1124, 4
      %v1135 = vrot.slane %v1126, 4
      %v1136 = vrot.slane %v1128, 4
      %v1137 = vsel %vm465, %v1129, %v1130
      %vm1138 = vcmask 916480
      %v1139 = vsel %vm1138, %v1114, %v1137
      %v1140 = vsel %vm465, %v1131, %v1132
      %v1141 = vsel %vm1138, %v1118, %v1140
      %v1142 = vsel %vm465, %v1133, %v1134
      %v1143 = vsel %vm1138, %v1122, %v1142
      %v1144 = vsel %vm465, %v1135, %v1136
      %v1145 = vsel %vm1138, %v1126, %v1144
      %1150 = vst [vmem:[#allocation3 + $0xe0] sm:$0xff] %v1139
      %1151 = vst [vmem:[#allocation3 + $0xe8] sm:$0xff] %v1141
      %1152 = vst [vmem:[#allocation3 + $0xf0] sm:$0xff] %v1143
      %1153 = vst [vmem:[#allocation3 + $0xf8] sm:$0xff] %v1145
      %v1154 = vld [vmem:[#allocation2 + $0x8] sm:$0xff]
      %v1155 = vld [vmem:[#allocation2 + $0x10] sm:$0xff]
      %v1156 = vld [vmem:[#allocation2 + $0x18] sm:$0xff]
      %v1157 = vld [vmem:[#allocation2 + $0x28] sm:$0xff]
      %v1158 = vld [vmem:[#allocation2 + $0x30] sm:$0xff]
      %v1159 = vld [vmem:[#allocation2 + $0x38] sm:$0xff]
      %v1160 = vld [vmem:[#allocation2 + $0x48] sm:$0xff]
      %v1161 = vld [vmem:[#allocation2 + $0x50] sm:$0xff]
      %v1162 = vld [vmem:[#allocation2 + $0x58] sm:$0xff]
      %v1163 = vld [vmem:[#allocation2 + $0x68] sm:$0xff]
      %v1164 = vld [vmem:[#allocation2 + $0x70] sm:$0xff]
      %v1165 = vld [vmem:[#allocation2 + $0x78] sm:$0xff]
      %v1166 = vld [vmem:[%s580] ss:$4 sm:$0x3]
      %v1168 = vlaneseq
      %v1169 = vshrl.u32 %v1168, 7
      %v1170 = vsub.s32 0, %v1169
      %v1171 = vrot.slane %v1166, %v1170
      %v1172 = vlaneseq
      %v1173 = vshrl.u32 %v1172, 7
      %v1174 = vsub.s32 1, %v1173
      %v1175 = vrot.slane %v1166, %v1174
      %1176 = vrot.lane.b32.xlu0 %v1171, 17
      %v1177 = vpop.permute.xlu0 %1176
      %1178 = vrot.lane.b32.xlu0 %v1175, 17
      %v1179 = vpop.permute.xlu0 %1178
      %vm1180 = vcmask 138240
      %v1181 = vsel %vm1180, %v1177, %v1179
      %v1185 = vmul.f32 %v1154, %v1177
      %v1186 = vmul.f32 %v1155, %v1181
      %v1187 = vmul.f32 %v1156, %v1179
      %v1188 = vmul.f32 %v1157, %v1177
      %v1189 = vmul.f32 %v1158, %v1181
      %v1190 = vmul.f32 %v1159, %v1179
      %v1191 = vmul.f32 %v1160, %v1177
      %v1192 = vmul.f32 %v1161, %v1181
      %v1193 = vmul.f32 %v1162, %v1179
      %v1194 = vmul.f32 %v1163, %v1177
      %v1195 = vmul.f32 %v1164, %v1181
      %v1196 = vmul.f32 %v1165, %v1179
      %v1197 = vpack.c.bf16 %v1188, %v1185
      %v1198 = vpack.c.bf16 %v1189, %v1186
      %v1199 = vpack.c.bf16 %v1190, %v1187
      %v1200 = vpack.c.bf16 %v1194, %v1191
      %v1201 = vpack.c.bf16 %v1195, %v1192
      %v1202 = vpack.c.bf16 %v1196, %v1193
      %v1209 = vunpack.c.l.b16 %v1197
      %v1210 = vunpack.c.l.b16 %v1198
      %v1211 = vunpack.c.l.b16 %v1199
      %v1212 = vunpack.c.h.b16 %v1197
      %v1213 = vunpack.c.h.b16 %v1198
      %v1214 = vunpack.c.h.b16 %v1199
      %v1215 = vunpack.c.l.b16 %v1200
      %v1216 = vunpack.c.l.b16 %v1201
      %v1217 = vunpack.c.l.b16 %v1202
      %v1218 = vunpack.c.h.b16 %v1200
      %v1219 = vunpack.c.h.b16 %v1201
      %v1220 = vunpack.c.h.b16 %v1202
      %v1221 = vpack.c.b16 %v1210, %v1209
      %v1222 = vpack.c.b16 %v1211, %v1211
      %v1223 = vpack.c.b16 %v1213, %v1212
      %v1224 = vpack.c.b16 %v1214, %v1214
      %v1225 = vpack.c.b16 %v1216, %v1215
      %v1226 = vpack.c.b16 %v1217, %v1217
      %v1227 = vpack.c.b16 %v1219, %v1218
      %v1228 = vpack.c.b16 %v1220, %v1220
      %1229 = vrot.lane.b32.xlu0 %v1221, 111
      %v1230 = vpop.permute.xlu0 %1229
      %1231 = vrot.lane.b32.xlu0 %v1222, 111
      %v1232 = vpop.permute.xlu0 %1231
      %1233 = vrot.lane.b32.xlu0 %v1223, 111
      %v1234 = vpop.permute.xlu0 %1233
      %1235 = vrot.lane.b32.xlu0 %v1224, 111
      %v1236 = vpop.permute.xlu0 %1235
      %1237 = vrot.lane.b32.xlu0 %v1225, 111
      %v1238 = vpop.permute.xlu0 %1237
      %1239 = vrot.lane.b32.xlu0 %v1226, 111
      %v1240 = vpop.permute.xlu0 %1239
      %1241 = vrot.lane.b32.xlu0 %v1227, 111
      %v1242 = vpop.permute.xlu0 %1241
      %1243 = vrot.lane.b32.xlu0 %v1228, 111
      %v1244 = vpop.permute.xlu0 %1243
      %v1245 = vrot.slane %v1230, 4
      %v1246 = vrot.slane %v1232, 4
      %v1247 = vrot.slane %v1234, 4
      %v1248 = vrot.slane %v1236, 4
      %v1249 = vrot.slane %v1238, 4
      %v1250 = vrot.slane %v1240, 4
      %v1251 = vrot.slane %v1242, 4
      %v1252 = vrot.slane %v1244, 4
      %v1253 = vsel %vm465, %v1245, %v1246
      %vm1254 = vcmask 908288
      %v1255 = vsel %vm1254, %v1230, %v1253
      %v1256 = vsel %vm465, %v1247, %v1248
      %v1257 = vsel %vm1254, %v1234, %v1256
      %v1258 = vsel %vm465, %v1249, %v1250
      %v1259 = vsel %vm1254, %v1238, %v1258
      %v1260 = vsel %vm465, %v1251, %v1252
      %v1261 = vsel %vm1254, %v1242, %v1260
      %1266 = vst [vmem:[#allocation3 + $0x100] sm:$0xff] %v1255
      %1267 = vst [vmem:[#allocation3 + $0x108] sm:$0xff] %v1257
      %1268 = vst [vmem:[#allocation3 + $0x110] sm:$0xff] %v1259
      %1269 = vst [vmem:[#allocation3 + $0x118] sm:$0xff] %v1261
      %v1270 = vld [vmem:[%s1] sm:$0xff]
      %v1271 = vld [vmem:[%s1 + $0x8] sm:$0xf]
      %v1272 = vld [vmem:[%s1 + $0xc] sm:$0xff]
      %v1273 = vld [vmem:[%s1 + $0x14] sm:$0xf]
      %v1274 = vld [vmem:[#allocation3] sm:$0xff]
      %v1275 = vld [vmem:[#allocation3 + $0x8] sm:$0xff]
      %v1276 = vld [vmem:[#allocation3 + $0x10] sm:$0xff]
      %v1277 = vld [vmem:[#allocation3 + $0x18] sm:$0xff]
      %v1278 = vld [vmem:[#allocation3 + $0x20] sm:$0xff]
      %v1279 = vld [vmem:[#allocation3 + $0x28] sm:$0xff]
      %v1280 = vld [vmem:[#allocation3 + $0x30] sm:$0xff]
      %v1281 = vld [vmem:[#allocation3 + $0x38] sm:$0xff]
      %v1282 = vld [vmem:[#allocation3 + $0x40] sm:$0xff]
      %v1283 = vld [vmem:[#allocation3 + $0x48] sm:$0xff]
      %v1284 = vld [vmem:[#allocation3 + $0x50] sm:$0xff]
      %v1285 = vld [vmem:[#allocation3 + $0x58] sm:$0xff]
      %v1286 = vld [vmem:[#allocation3 + $0x60] sm:$0xff]
      %v1287 = vld [vmem:[#allocation3 + $0x68] sm:$0xff]
      %v1288 = vld [vmem:[#allocation3 + $0x70] sm:$0xff]
      %v1289 = vld [vmem:[#allocation3 + $0x78] sm:$0xff]
      %v1290 = vld [vmem:[#allocation3 + $0x80] sm:$0xff]
      %v1291 = vld [vmem:[#allocation3 + $0x88] sm:$0xff]
      %v1292 = vld [vmem:[#allocation3 + $0x90] sm:$0xff]
      %v1293 = vld [vmem:[#allocation3 + $0x98] sm:$0xff]
      %v1294 = vld [vmem:[#allocation3 + $0xa0] sm:$0xff]
      %v1295 = vld [vmem:[#allocation3 + $0xa8] sm:$0xff]
      %v1296 = vld [vmem:[#allocation3 + $0xb0] sm:$0xff]
      %v1297 = vld [vmem:[#allocation3 + $0xb8] sm:$0xff]
      %v1298 = vld [vmem:[#allocation3 + $0xc0] sm:$0xff]
      %v1299 = vld [vmem:[#allocation3 + $0xc8] sm:$0xff]
      %v1300 = vld [vmem:[#allocation3 + $0xd0] sm:$0xff]
      %v1301 = vld [vmem:[#allocation3 + $0xd8] sm:$0xff]
      %v1302 = vld [vmem:[#allocation3 + $0xe0] sm:$0xff]
      %v1303 = vld [vmem:[#allocation3 + $0xe8] sm:$0xff]
      %v1304 = vld [vmem:[#allocation3 + $0xf0] sm:$0xff]
      %v1305 = vld [vmem:[#allocation3 + $0xf8] sm:$0xff]
      %v1306 = vld [vmem:[#allocation3 + $0x100] sm:$0xff]
      %v1307 = vld [vmem:[#allocation3 + $0x108] sm:$0xff]
      %v1308 = vld [vmem:[#allocation3 + $0x110] sm:$0xff]
      %v1309 = vld [vmem:[#allocation3 + $0x118] sm:$0xff]
      %v1310 = vld [vmem:[%s2] sm:$0xff]
      %v1311 = vld [vmem:[%s2 + $0x8] sm:$0xff]
      %1313 = vset.pattern.permute.xlu0 0
      %1314 = vperm.xlu0 %1313, %v1310
      %v1315 = vpop.permute.xlu0 %1314
      %1318 = vset.pattern.permute.xlu0 0
      %1319 = vperm.xlu0 %1318, %v1311
      %v1320 = vpop.permute.xlu0 %1319
      %v1326 = vunpack.c.l.b16 %v1270
      %v1327 = vunpack.c.h.b16 %v1270
      %v1328 = vunpack.c.l.b16 %v1271
      %v1329 = vunpack.c.l.b16 %v1272
      %v1330 = vunpack.c.h.b16 %v1272
      %v1331 = vunpack.c.l.b16 %v1273
      %v1332 = vpack.c.b16 %v1329, %v1326
      %v1333 = vpack.c.b16 %v1330, %v1327
      %v1334 = vpack.c.b16 %v1331, %v1328
      %v1373 = vunpack.c.l.b16 %v1274
      %v1374 = vunpack.c.h.b16 %v1274
      %v1375 = vunpack.c.l.b16 %v1275
      %v1376 = vunpack.c.h.b16 %v1275
      %v1377 = vunpack.c.l.b16 %v1276
      %v1378 = vunpack.c.h.b16 %v1276
      %v1379 = vunpack.c.l.b16 %v1277
      %v1380 = vunpack.c.h.b16 %v1277
      %v1381 = vunpack.c.l.b16 %v1278
      %v1382 = vunpack.c.h.b16 %v1278
      %v1383 = vunpack.c.l.b16 %v1279
      %v1384 = vunpack.c.h.b16 %v1279
      %v1385 = vunpack.c.l.b16 %v1280
      %v1386 = vunpack.c.h.b16 %v1280
      %v1387 = vunpack.c.l.b16 %v1281
      %v1388 = vunpack.c.h.b16 %v1281
      %v1389 = vunpack.c.l.b16 %v1282
      %v1390 = vunpack.c.h.b16 %v1282
      %v1391 = vunpack.c.l.b16 %v1283
      %v1392 = vunpack.c.h.b16 %v1283
      %v1393 = vunpack.c.l.b16 %v1284
      %v1394 = vunpack.c.h.b16 %v1284
      %v1395 = vunpack.c.l.b16 %v1285
      %v1396 = vunpack.c.h.b16 %v1285
      %v1397 = vunpack.c.l.b16 %v1286
      %v1398 = vunpack.c.h.b16 %v1286
      %v1399 = vunpack.c.l.b16 %v1287
      %v1400 = vunpack.c.h.b16 %v1287
      %v1401 = vunpack.c.l.b16 %v1288
      %v1402 = vunpack.c.h.b16 %v1288
      %v1403 = vunpack.c.l.b16 %v1289
      %v1404 = vunpack.c.h.b16 %v1289
      %v1405 = vunpack.c.l.b16 %v1290
      %v1406 = vunpack.c.h.b16 %v1290
      %v1407 = vunpack.c.l.b16 %v1291
      %v1408 = vunpack.c.h.b16 %v1291
      %v1409 = vunpack.c.l.b16 %v1292
      %v1410 = vunpack.c.h.b16 %v1292
      %v1411 = vunpack.c.l.b16 %v1293
      %v1412 = vunpack.c.h.b16 %v1293
      %v1413 = vunpack.c.l.b16 %v1294
      %v1414 = vunpack.c.h.b16 %v1294
      %v1415 = vunpack.c.l.b16 %v1295
      %v1416 = vunpack.c.h.b16 %v1295
      %v1417 = vunpack.c.l.b16 %v1296
      %v1418 = vunpack.c.h.b16 %v1296
      %v1419 = vunpack.c.l.b16 %v1297
      %v1420 = vunpack.c.h.b16 %v1297
      %v1421 = vunpack.c.l.b16 %v1298
      %v1422 = vunpack.c.h.b16 %v1298
      %v1423 = vunpack.c.l.b16 %v1299
      %v1424 = vunpack.c.h.b16 %v1299
      %v1425 = vunpack.c.l.b16 %v1300
      %v1426 = vunpack.c.h.b16 %v1300
      %v1427 = vunpack.c.l.b16 %v1301
      %v1428 = vunpack.c.h.b16 %v1301
      %v1429 = vunpack.c.l.b16 %v1302
      %v1430 = vunpack.c.h.b16 %v1302
      %v1431 = vunpack.c.l.b16 %v1303
      %v1432 = vunpack.c.h.b16 %v1303
      %v1433 = vunpack.c.l.b16 %v1304
      %v1434 = vunpack.c.h.b16 %v1304
      %v1435 = vunpack.c.l.b16 %v1305
      %v1436 = vunpack.c.h.b16 %v1305
      %v1437 = vunpack.c.l.b16 %v1306
      %v1438 = vunpack.c.h.b16 %v1306
      %v1439 = vunpack.c.l.b16 %v1307
      %v1440 = vunpack.c.h.b16 %v1307
      %v1441 = vunpack.c.l.b16 %v1308
      %v1442 = vunpack.c.h.b16 %v1308
      %v1443 = vunpack.c.l.b16 %v1309
      %v1444 = vunpack.c.h.b16 %v1309
      %v1445 = vpack.c.b16 %v1375, %v1373
      %v1446 = vpack.c.b16 %v1376, %v1374
      %v1447 = vpack.c.b16 %v1379, %v1377
      %v1448 = vpack.c.b16 %v1380, %v1378
      %v1449 = vpack.c.b16 %v1383, %v1381
      %v1450 = vpack.c.b16 %v1384, %v1382
      %v1451 = vpack.c.b16 %v1387, %v1385
      %v1452 = vpack.c.b16 %v1388, %v1386
      %v1453 = vpack.c.b16 %v1391, %v1389
      %v1454 = vpack.c.b16 %v1392, %v1390
      %v1455 = vpack.c.b16 %v1395, %v1393
      %v1456 = vpack.c.b16 %v1396, %v1394
      %v1457 = vpack.c.b16 %v1399, %v1397
      %v1458 = vpack.c.b16 %v1400, %v1398
      %v1459 = vpack.c.b16 %v1403, %v1401
      %v1460 = vpack.c.b16 %v1404, %v1402
      %v1461 = vpack.c.b16 %v1407, %v1405
      %v1462 = vpack.c.b16 %v1408, %v1406
      %v1463 = vpack.c.b16 %v1411, %v1409
      %v1464 = vpack.c.b16 %v1412, %v1410
      %v1465 = vpack.c.b16 %v1415, %v1413
      %v1466 = vpack.c.b16 %v1416, %v1414
      %v1467 = vpack.c.b16 %v1419, %v1417
      %v1468 = vpack.c.b16 %v1420, %v1418
      %v1469 = vpack.c.b16 %v1423, %v1421
      %v1470 = vpack.c.b16 %v1424, %v1422
      %v1471 = vpack.c.b16 %v1427, %v1425
      %v1472 = vpack.c.b16 %v1428, %v1426
      %v1473 = vpack.c.b16 %v1431, %v1429
      %v1474 = vpack.c.b16 %v1432, %v1430
      %v1475 = vpack.c.b16 %v1435, %v1433
      %v1476 = vpack.c.b16 %v1436, %v1434
      %v1477 = vpack.c.b16 %v1439, %v1437
      %v1478 = vpack.c.b16 %v1440, %v1438
      %v1479 = vpack.c.b16 %v1443, %v1441
      %v1480 = vpack.c.b16 %v1444, %v1442
      %vm1517 = vcmask 261120
      %v1519 = vsel %vm1517, %v1334, 0
      %1521 = vmatprep.subr.bf16.mxu0 %v1460
      %1522 = vmatpush1.bf16.msra.mxu0 %v1459
      %1523 = vmatprep.subr.bf16.mxu0 %v1458
      %1524 = vmatpush1.bf16.msra.mxu0 %v1457
      %1525 = vmatprep.subr.bf16.mxu0 %v1456
      %1526 = vmatpush1.bf16.msra.mxu0 %v1455
      %1527 = vmatprep.subr.bf16.mxu0 %v1454
      %1528 = vmatpush1.bf16.msra.mxu0 %v1453
      %1529 = vmatprep.subr.bf16.mxu0 %v1452
      %1530 = vmatpush1.bf16.msra.mxu0 %v1451
      %1531 = vmatprep.subr.bf16.mxu0 %v1450
      %1532 = vmatpush1.bf16.msra.mxu0 %v1449
      %1533 = vmatprep.subr.bf16.mxu0 %v1448
      %1534 = vmatpush1.bf16.msra.mxu0 %v1447
      %1535 = vmatprep.subr.bf16.mxu0 %v1446
      %1536 = vmatpush1.bf16.msra.mxu0 %v1445
      %1537 = vmatprep.subr.bf16.mxu0 %v1476
      %1538 = vmatpush2.bf16.msra.mxu0 %v1475
      %1539 = vmatprep.subr.bf16.mxu0 %v1474
      %1540 = vmatpush2.bf16.msra.mxu0 %v1473
      %1541 = vmatprep.subr.bf16.mxu0 %v1472
      %1542 = vmatpush2.bf16.msra.mxu0 %v1471
      %1543 = vmatprep.subr.bf16.mxu0 %v1470
      %1544 = vmatpush2.bf16.msra.mxu0 %v1469
      %1545 = vmatprep.subr.bf16.mxu0 %v1468
      %1546 = vmatpush2.bf16.msra.mxu0 %v1467
      %1547 = vmatprep.subr.bf16.mxu0 %v1466
      %1548 = vmatpush2.bf16.msra.mxu0 %v1465
      %1549 = vmatprep.subr.bf16.mxu0 %v1464
      %1550 = vmatpush2.bf16.msra.mxu0 %v1463
      %1551 = vmatprep.subr.bf16.mxu0 %v1462
      %1552 = vmatpush2.bf16.msra.mxu0 %v1461
      %1553 = vmatprep.mubr.bf16.mxu0 %v1333
      %1554 = vmatmul.mubr.bf16.gmra.mxu0 %v1332
      %v1555 = vpop.f32.mrf.mxu0
      %v1556 = vadd.f32 %v1315, %v1555
      %v1557 = vpop.f32.mrf.mxu0
      %v1558 = vadd.f32 %v1315, %v1557
      %v1559 = vpop.f32.mrf.mxu0
      %v1560 = vadd.f32 %v1320, %v1559
      %v1561 = vpop.f32.mrf.mxu0
      %v1562 = vadd.f32 %v1320, %v1561
      %1563 = vdwg.mxu0
      %1564 = vmatprep.subr.bf16.mxu0 0
      %1565 = vmatpush1.bf16.msra.mxu0 0
      %1566 = vmatprep.subr.bf16.mxu0 0
      %1567 = vmatpush1.bf16.msra.mxu0 0
      %1568 = vmatprep.subr.bf16.mxu0 0
      %1569 = vmatpush1.bf16.msra.mxu0 0
      %1570 = vmatprep.subr.bf16.mxu0 0
      %1571 = vmatpush1.bf16.msra.mxu0 0
      %1572 = vmatprep.subr.bf16.mxu0 0
      %1573 = vmatpush1.bf16.msra.mxu0 0
      %1574 = vmatprep.subr.bf16.mxu0 0
      %1575 = vmatpush1.bf16.msra.mxu0 0
      %1576 = vmatprep.subr.bf16.mxu0 %v1480
      %1577 = vmatpush1.bf16.msra.mxu0 %v1479
      %1578 = vmatprep.subr.bf16.mxu0 %v1478
      %1579 = vmatpush1.bf16.msra.mxu0 %v1477
      %1580 = vmatprep.subr.bf16.mxu0 0
      %1581 = vmatpush2.bf16.msra.mxu0 0
      %1582 = vmatprep.subr.bf16.mxu0 0
      %1583 = vmatpush2.bf16.msra.mxu0 0
      %1584 = vmatprep.subr.bf16.mxu0 0
      %1585 = vmatpush2.bf16.msra.mxu0 0
      %1586 = vmatprep.subr.bf16.mxu0 0
      %1587 = vmatpush2.bf16.msra.mxu0 0
      %1588 = vmatprep.subr.bf16.mxu0 0
      %1589 = vmatpush2.bf16.msra.mxu0 0
      %1590 = vmatprep.subr.bf16.mxu0 0
      %1591 = vmatpush2.bf16.msra.mxu0 0
      %1592 = vmatprep.subr.bf16.mxu0 0
      %1593 = vmatpush2.bf16.msra.mxu0 0
      %1594 = vmatprep.subr.bf16.mxu0 0
      %1595 = vmatpush2.bf16.msra.mxu0 0
      %1596 = vmatprep.mubr.bf16.mxu0 0
      %1597 = vmatmul.mubr.bf16.gmra.mxu0 %v1519
      %v1598 = vpop.f32.mrf.mxu0
      %v1599 = vadd.f32 %v1556, %v1598
      %v1600 = vpop.f32.mrf.mxu0
      %v1601 = vadd.f32 %v1558, %v1600
      %v1602 = vpop.f32.mrf.mxu0
      %v1603 = vadd.f32 %v1560, %v1602
      %v1604 = vpop.f32.mrf.mxu0
      %v1605 = vadd.f32 %v1562, %v1604
      %1606 = vdwg.mxu0
      %v1607 = vadd.f32 %v1599, %v1601
      %1608 = vadd.xlane.f32.xlu0 %v1607
      %v1609 = vpop.xlane.xlu0 %1608
      %v1610 = vadd.f32 %v1603, %v1605
      %1611 = vadd.xlane.f32.xlu0 %v1610
      %v1612 = vpop.xlane.xlu0 %1611
      %v1613 = vmul.f32 %v1599, %v1599
      %v1614 = vmul.f32 %v1601, %v1601
      %v1615 = vmul.f32 %v1603, %v1603
      %v1616 = vmul.f32 %v1605, %v1605
      %v1617 = vadd.f32 %v1613, %v1614
      %1618 = vadd.xlane.f32.xlu0 %v1617
      %v1619 = vpop.xlane.xlu0 %1618
      %v1620 = vadd.f32 %v1615, %v1616
      %1621 = vadd.xlane.f32.xlu0 %v1620
      %v1622 = vpop.xlane.xlu0 %1621
      %v1623 = vld [vmem:[%s3] sm:$0xff]
      %v1624 = vld [vmem:[%s3 + $0x8] sm:$0xff]
      %vm1625 = vcmask 130048
      %v1627 = vsel %vm1625, %v1623, 0
      %v1630 = vsel %vm1625, %v1624, 0
      %1632 = vmatprep.subr.mxu0 0.0
      %1633 = vmatpush1.msra.mxu0 0.0
      %1634 = vmatprep.subr.mxu0 0.0
      %1635 = vmatpush1.msra.mxu0 0.0
      %1636 = vmatprep.subr.mxu0 0.0
      %1637 = vmatpush1.msra.mxu0 0.0
      %1638 = vmatprep.subr.mxu0 0.0
      %1639 = vmatpush1.msra.mxu0 0.0
      %1640 = vmatprep.subr.mxu0 0.0
      %1641 = vmatpush1.msra.mxu0 0.0
      %1642 = vmatprep.subr.mxu0 0.0
      %1643 = vmatpush1.msra.mxu0 0.0
      %1644 = vmatprep.subr.mxu0 0.0
      %1645 = vmatpush1.msra.mxu0 0.0
      %1646 = vmatprep.subr.mxu0 0.0
      %1647 = vmatpush1.msra.mxu0 0.0
      %1648 = vmatprep.subr.mxu0 0.0
      %1649 = vmatpush1.msra.mxu0 0.0
      %1650 = vmatprep.subr.mxu0 0.0
      %1651 = vmatpush1.msra.mxu0 0.0
      %1652 = vmatprep.subr.mxu0 0.0
      %1653 = vmatpush1.msra.mxu0 0.0
      %1654 = vmatprep.subr.mxu0 0.0
      %1655 = vmatpush1.msra.mxu0 0.0
      %1656 = vmatprep.subr.mxu0 0.0
      %1657 = vmatpush1.msra.mxu0 0.0
      %1658 = vmatprep.subr.mxu0 0.0
      %1659 = vmatpush1.msra.mxu0 0.0
      %1660 = vmatprep.subr.mxu0 0.0
      %1661 = vmatpush1.msra.mxu0 %v1612
      %1662 = vmatprep.subr.mxu0 0.0
      %1663 = vmatpush1.msra.mxu0 %v1609
      %1664 = vmatprep.subr.mxu0 0.0
      %1665 = vmatpush2.msra.mxu0 0.0
      %1666 = vmatprep.subr.mxu0 0.0
      %1667 = vmatpush2.msra.mxu0 0.0
      %1668 = vmatprep.subr.mxu0 0.0
      %1669 = vmatpush2.msra.mxu0 0.0
      %1670 = vmatprep.subr.mxu0 0.0
      %1671 = vmatpush2.msra.mxu0 0.0
      %1672 = vmatprep.subr.mxu0 0.0
      %1673 = vmatpush2.msra.mxu0 0.0
      %1674 = vmatprep.subr.mxu0 0.0
      %1675 = vmatpush2.msra.mxu0 0.0
      %1676 = vmatprep.subr.mxu0 0.0
      %1677 = vmatpush2.msra.mxu0 0.0
      %1678 = vmatprep.subr.mxu0 0.0
      %1679 = vmatpush2.msra.mxu0 0.0
      %1680 = vmatprep.subr.mxu0 0.0
      %1681 = vmatpush2.msra.mxu0 0.0
      %1682 = vmatprep.subr.mxu0 0.0
      %1683 = vmatpush2.msra.mxu0 0.0
      %1684 = vmatprep.subr.mxu0 0.0
      %1685 = vmatpush2.msra.mxu0 0.0
      %1686 = vmatprep.subr.mxu0 0.0
      %1687 = vmatpush2.msra.mxu0 0.0
      %1688 = vmatprep.subr.mxu0 0.0
      %1689 = vmatpush2.msra.mxu0 0.0
      %1690 = vmatprep.subr.mxu0 0.0
      %1691 = vmatpush2.msra.mxu0 0.0
      %1692 = vmatprep.subr.mxu0 0.0
      %1693 = vmatpush2.msra.mxu0 0.0
      %1694 = vmatprep.subr.mxu0 0.0
      %1695 = vmatpush2.msra.mxu0 0.0
      %1696 = vmatprep.mubr.f32.mxu0 0.0
      %1697 = vmatmul.mubr.f32.gmra.mxu0 %v1627
      %v1698 = vpop.f32.mrf.mxu0
      %v1699 = vadd.f32 0.0, %v1698
      %v1700 = vpop.f32.mrf.mxu0
      %1701 = vmatprep.mubr.f32.mxu0 0.0
      %1702 = vmatmul.mubr.f32.gmra.mxu0 %v1630
      %v1703 = vpop.f32.mrf.mxu0
      %v1704 = vadd.f32 0.0, %v1703
      %v1705 = vpop.f32.mrf.mxu0
      %1706 = vdwg.mxu0
      %1707 = vmatprep.subr.mxu0 0.0
      %1708 = vmatpush1.msra.mxu0 0.0
      %1709 = vmatprep.subr.mxu0 0.0
      %1710 = vmatpush1.msra.mxu0 0.0
      %1711 = vmatprep.subr.mxu0 0.0
      %1712 = vmatpush1.msra.mxu0 0.0
      %1713 = vmatprep.subr.mxu0 0.0
      %1714 = vmatpush1.msra.mxu0 0.0
      %1715 = vmatprep.subr.mxu0 0.0
      %1716 = vmatpush1.msra.mxu0 0.0
      %1717 = vmatprep.subr.mxu0 0.0
      %1718 = vmatpush1.msra.mxu0 0.0
      %1719 = vmatprep.subr.mxu0 0.0
      %1720 = vmatpush1.msra.mxu0 0.0
      %1721 = vmatprep.subr.mxu0 0.0
      %1722 = vmatpush1.msra.mxu0 0.0
      %1723 = vmatprep.subr.mxu0 0.0
      %1724 = vmatpush1.msra.mxu0 0.0
      %1725 = vmatprep.subr.mxu0 0.0
      %1726 = vmatpush1.msra.mxu0 0.0
      %1727 = vmatprep.subr.mxu0 0.0
      %1728 = vmatpush1.msra.mxu0 0.0
      %1729 = vmatprep.subr.mxu0 0.0
      %1730 = vmatpush1.msra.mxu0 0.0
      %1731 = vmatprep.subr.mxu0 0.0
      %1732 = vmatpush1.msra.mxu0 0.0
      %1733 = vmatprep.subr.mxu0 0.0
      %1734 = vmatpush1.msra.mxu0 0.0
      %1735 = vmatprep.subr.mxu0 0.0
      %1736 = vmatpush1.msra.mxu0 %v1622
      %1737 = vmatprep.subr.mxu0 0.0
      %1738 = vmatpush1.msra.mxu0 %v1619
      %1739 = vmatprep.subr.mxu0 0.0
      %1740 = vmatpush2.msra.mxu0 0.0
      %1741 = vmatprep.subr.mxu0 0.0
      %1742 = vmatpush2.msra.mxu0 0.0
      %1743 = vmatprep.subr.mxu0 0.0
      %1744 = vmatpush2.msra.mxu0 0.0
      %1745 = vmatprep.subr.mxu0 0.0
      %1746 = vmatpush2.msra.mxu0 0.0
      %1747 = vmatprep.subr.mxu0 0.0
      %1748 = vmatpush2.msra.mxu0 0.0
      %1749 = vmatprep.subr.mxu0 0.0
      %1750 = vmatpush2.msra.mxu0 0.0
      %1751 = vmatprep.subr.mxu0 0.0
      %1752 = vmatpush2.msra.mxu0 0.0
      %1753 = vmatprep.subr.mxu0 0.0
      %1754 = vmatpush2.msra.mxu0 0.0
      %1755 = vmatprep.subr.mxu0 0.0
      %1756 = vmatpush2.msra.mxu0 0.0
      %1757 = vmatprep.subr.mxu0 0.0
      %1758 = vmatpush2.msra.mxu0 0.0
      %1759 = vmatprep.subr.mxu0 0.0
      %1760 = vmatpush2.msra.mxu0 0.0
      %1761 = vmatprep.subr.mxu0 0.0
      %1762 = vmatpush2.msra.mxu0 0.0
      %1763 = vmatprep.subr.mxu0 0.0
      %1764 = vmatpush2.msra.mxu0 0.0
      %1765 = vmatprep.subr.mxu0 0.0
      %1766 = vmatpush2.msra.mxu0 0.0
      %1767 = vmatprep.subr.mxu0 0.0
      %1768 = vmatpush2.msra.mxu0 0.0
      %1769 = vmatprep.subr.mxu0 0.0
      %1770 = vmatpush2.msra.mxu0 0.0
      %1771 = vmatprep.mubr.f32.mxu0 0.0
      %1772 = vmatmul.mubr.f32.gmra.mxu0 %v1627
      %v1773 = vpop.f32.mrf.mxu0
      %v1774 = vadd.f32 0.0, %v1773
      %v1775 = vpop.f32.mrf.mxu0
      %1776 = vmatprep.mubr.f32.mxu0 0.0
      %1777 = vmatmul.mubr.f32.gmra.mxu0 %v1630
      %v1778 = vpop.f32.mrf.mxu0
      %v1779 = vadd.f32 0.0, %v1778
      %v1780 = vpop.f32.mrf.mxu0
      %1781 = vdwg.mxu0
      %v1782 = vmul.f32 %v1699, %v1699
      %v1783 = vmul.f32 %v1704, %v1704
      %v1784 = vsub.f32 %v1774, %v1782
      %v1785 = vsub.f32 %v1779, %v1783
      %v1786 = vmax.f32 %v1784, 0.0
      %v1787 = vmax.f32 %v1785, 0.0
      %v1788 = vadd.f32 %v1786, 1e-05
      %v1789 = vadd.f32 %v1787, 1e-05
      %v1790 = vrsqrt.pop %v1788
      %v1791 = vrsqrt.pop %v1789
      %1793 = vset.pattern.permute.xlu0 0
      %1794 = vperm.xlu0 %1793, %v1699
      %v1795 = vpop.permute.xlu0 %1794
      %1798 = vset.pattern.permute.xlu0 0
      %1799 = vperm.xlu0 %1798, %v1704
      %v1800 = vpop.permute.xlu0 %1799
      %v1802 = vsub.f32 %v1599, %v1795
      %v1803 = vsub.f32 %v1601, %v1795
      %v1804 = vsub.f32 %v1603, %v1800
      %v1805 = vsub.f32 %v1605, %v1800
      %v1806 = vld [vmem:[%s4] sm:$0xff]
      %v1807 = vld [vmem:[%s4 + $0x8] sm:$0xff]
      %v1808 = vmul.f32 %v1790, %v1806
      %v1809 = vmul.f32 %v1791, %v1807
      %1811 = vset.pattern.permute.xlu0 0
      %1812 = vperm.xlu0 %1811, %v1808
      %v1813 = vpop.permute.xlu0 %1812
      %1816 = vset.pattern.permute.xlu0 0
      %1817 = vperm.xlu0 %1816, %v1809
      %v1818 = vpop.permute.xlu0 %1817
      %v1820 = vmul.f32 %v1802, %v1813
      %v1821 = vmul.f32 %v1803, %v1813
      %v1822 = vmul.f32 %v1804, %v1818
      %v1823 = vmul.f32 %v1805, %v1818
      %v1824 = vld [vmem:[%s5] sm:$0xff]
      %v1825 = vld [vmem:[%s5 + $0x8] sm:$0xff]
      %1827 = vset.pattern.permute.xlu0 0
      %1828 = vperm.xlu0 %1827, %v1824
      %v1829 = vpop.permute.xlu0 %1828
      %1832 = vset.pattern.permute.xlu0 0
      %1833 = vperm.xlu0 %1832, %v1825
      %v1834 = vpop.permute.xlu0 %1833
      %v1836 = vadd.f32 %v1820, %v1829
      %v1837 = vadd.f32 %v1821, %v1829
      %v1838 = vadd.f32 %v1822, %v1834
      %v1839 = vadd.f32 %v1823, %v1834
      %v1840 = vmax.f32 %v1836, 0.0
      %v1841 = vmax.f32 %v1837, 0.0
      %v1842 = vmax.f32 %v1838, 0.0
      %v1843 = vmax.f32 %v1839, 0.0
      %1844 = vst [vmem:[#allocation4] sm:$0xff] 0.0
      %1845 = vst [vmem:[#allocation4 + $0x8] sm:$0xff] 0.0
      %1846 = vst [vmem:[#allocation4 + $0x10] sm:$0xff] 0.0
      %1847 = vst [vmem:[#allocation4 + $0x18] sm:$0xff] 0.0
      %1848 = vst [vmem:[#allocation4 + $0x20] sm:$0xff] 0.0
      %1849 = vst [vmem:[#allocation4 + $0x28] sm:$0xff] 0.0
      %1850 = vst [vmem:[#allocation4 + $0x30] sm:$0xff] 0.0
      %1851 = vst [vmem:[#allocation4 + $0x38] sm:$0xff] 0.0
      %1852 = vst [vmem:[#allocation4 + $0x8] sm:$0xff] %v1840
      %1853 = vst [vmem:[#allocation4 + $0x10] sm:$0xff] %v1841
      %1854 = vst [vmem:[#allocation4 + $0x28] sm:$0xff] %v1842
      %1855 = vst [vmem:[#allocation4 + $0x30] sm:$0xff] %v1843
      %v1856 = vld [vmem:[#allocation4] sm:$0xff]
      %v1857 = vld [vmem:[#allocation4 + $0x8] sm:$0xff]
      %v1858 = vld [vmem:[#allocation4 + $0x10] sm:$0xff]
      %v1859 = vld [vmem:[#allocation4 + $0x20] sm:$0xff]
      %v1860 = vld [vmem:[#allocation4 + $0x28] sm:$0xff]
      %v1861 = vld [vmem:[#allocation4 + $0x30] sm:$0xff]
      %v1862 = vld [vmem:[%s8] ss:$4 sm:$0x3]
      %v1864 = vlaneseq
      %v1865 = vshrl.u32 %v1864, 7
      %v1866 = vsub.s32 0, %v1865
      %v1867 = vrot.slane %v1862, %v1866
      %v1868 = vlaneseq
      %v1869 = vshrl.u32 %v1868, 7
      %v1870 = vsub.s32 1, %v1869
      %v1871 = vrot.slane %v1862, %v1870
      %1872 = vrot.lane.b32.xlu0 %v1867, 111
      %v1873 = vpop.permute.xlu0 %1872
      %1874 = vrot.lane.b32.xlu0 %v1871, 111
      %v1875 = vpop.permute.xlu0 %1874
      %v1876 = vsel %vm392, %v1873, %v1875
      %v1880 = vmul.f32 %v1856, %v1873
      %v1881 = vmul.f32 %v1857, %v1876
      %v1882 = vmul.f32 %v1858, %v1875
      %v1883 = vmul.f32 %v1859, %v1873
      %v1884 = vmul.f32 %v1860, %v1876
      %v1885 = vmul.f32 %v1861, %v1875
      %v1886 = vpack.c.bf16 %v1883, %v1880
      %v1887 = vpack.c.bf16 %v1884, %v1881
      %v1888 = vpack.c.bf16 %v1885, %v1882
      %v1892 = vunpack.c.l.b16 %v1886
      %v1893 = vunpack.c.l.b16 %v1887
      %v1894 = vunpack.c.l.b16 %v1888
      %v1895 = vunpack.c.h.b16 %v1886
      %v1896 = vunpack.c.h.b16 %v1887
      %v1897 = vunpack.c.h.b16 %v1888
      %v1898 = vpack.c.b16 %v1893, %v1892
      %v1899 = vpack.c.b16 %v1894, %v1894
      %v1900 = vpack.c.b16 %v1896, %v1895
      %v1901 = vpack.c.b16 %v1897, %v1897
      %1902 = vrot.lane.b32.xlu0 %v1898, 17
      %v1903 = vpop.permute.xlu0 %1902
      %1904 = vrot.lane.b32.xlu0 %v1899, 17
      %v1905 = vpop.permute.xlu0 %1904
      %1906 = vrot.lane.b32.xlu0 %v1900, 17
      %v1907 = vpop.permute.xlu0 %1906
      %1908 = vrot.lane.b32.xlu0 %v1901, 17
      %v1909 = vpop.permute.xlu0 %1908
      %v1910 = vrot.slane %v1903, 4
      %v1911 = vrot.slane %v1905, 4
      %v1912 = vrot.slane %v1907, 4
      %v1913 = vrot.slane %v1909, 4
      %v1914 = vsel %vm465, %v1910, %v1911
      %v1915 = vsel %vm467, %v1903, %v1914
      %v1916 = vsel %vm465, %v1912, %v1913
      %v1917 = vsel %vm467, %v1907, %v1916
      %1920 = vst [vmem:[#allocation5] sm:$0xff] %v1915
      %1921 = vst [vmem:[#allocation5 + $0x8] sm:$0xff] %v1917
      %v1922 = vld [vmem:[#allocation4] sm:$0xff]
      %v1923 = vld [vmem:[#allocation4 + $0x8] sm:$0xff]
      %v1924 = vld [vmem:[#allocation4 + $0x10] sm:$0xff]
      %v1925 = vld [vmem:[#allocation4 + $0x20] sm:$0xff]
      %v1926 = vld [vmem:[#allocation4 + $0x28] sm:$0xff]
      %v1927 = vld [vmem:[#allocation4 + $0x30] sm:$0xff]
      %v1928 = vpack.c.bf16 %v1925, %v1922
      %v1929 = vpack.c.bf16 %v1926, %v1923
      %v1930 = vpack.c.bf16 %v1927, %v1924
      %v1934 = vunpack.c.l.b16 %v1928
      %v1935 = vunpack.c.l.b16 %v1929
      %v1936 = vunpack.c.l.b16 %v1930
      %v1937 = vunpack.c.h.b16 %v1928
      %v1938 = vunpack.c.h.b16 %v1929
      %v1939 = vunpack.c.h.b16 %v1930
      %v1940 = vpack.c.b16 %v1935, %v1934
      %v1941 = vpack.c.b16 %v1936, %v1936
      %v1942 = vpack.c.b16 %v1938, %v1937
      %v1943 = vpack.c.b16 %v1939, %v1939
      %1944 = vrot.lane.b32.xlu0 %v1940, 16
      %v1945 = vpop.permute.xlu0 %1944
      %1946 = vrot.lane.b32.xlu0 %v1941, 16
      %v1947 = vpop.permute.xlu0 %1946
      %1948 = vrot.lane.b32.xlu0 %v1942, 16
      %v1949 = vpop.permute.xlu0 %1948
      %1950 = vrot.lane.b32.xlu0 %v1943, 16
      %v1951 = vpop.permute.xlu0 %1950
      %v1952 = vrot.slane %v1945, 4
      %v1953 = vrot.slane %v1947, 4
      %v1954 = vrot.slane %v1949, 4
      %v1955 = vrot.slane %v1951, 4
      %v1956 = vsel %vm465, %v1952, %v1953
      %v1957 = vsel %vm552, %v1945, %v1956
      %v1958 = vsel %vm465, %v1954, %v1955
      %v1959 = vsel %vm552, %v1949, %v1958
      %1962 = vst [vmem:[#allocation5 + $0x10] sm:$0xff] %v1957
      %1963 = vst [vmem:[#allocation5 + $0x18] sm:$0xff] %v1959
      %v1964 = vld [vmem:[#allocation4] sm:$0xff]
      %v1965 = vld [vmem:[#allocation4 + $0x8] sm:$0xff]
      %v1966 = vld [vmem:[#allocation4 + $0x10] sm:$0xff]
      %v1967 = vld [vmem:[#allocation4 + $0x20] sm:$0xff]
      %v1968 = vld [vmem:[#allocation4 + $0x28] sm:$0xff]
      %v1969 = vld [vmem:[#allocation4 + $0x30] sm:$0xff]
      %v1970 = vld [vmem:[%s580] ss:$4 sm:$0x3]
      %v1972 = vlaneseq
      %v1973 = vshrl.u32 %v1972, 7
      %v1974 = vsub.s32 0, %v1973
      %v1975 = vrot.slane %v1970, %v1974
      %v1976 = vlaneseq
      %v1977 = vshrl.u32 %v1976, 7
      %v1978 = vsub.s32 1, %v1977
      %v1979 = vrot.slane %v1970, %v1978
      %1980 = vrot.lane.b32.xlu0 %v1975, 113
      %v1981 = vpop.permute.xlu0 %1980
      %1982 = vrot.lane.b32.xlu0 %v1979, 113
      %v1983 = vpop.permute.xlu0 %1982
      %v1984 = vsel %vm595, %v1981, %v1983
      %v1988 = vmul.f32 %v1964, %v1981
      %v1989 = vmul.f32 %v1965, %v1984
      %v1990 = vmul.f32 %v1966, %v1983
      %v1991 = vmul.f32 %v1967, %v1981
      %v1992 = vmul.f32 %v1968, %v1984
      %v1993 = vmul.f32 %v1969, %v1983
      %v1994 = vpack.c.bf16 %v1991, %v1988
      %v1995 = vpack.c.bf16 %v1992, %v1989
      %v1996 = vpack.c.bf16 %v1993, %v1990
      %v2000 = vunpack.c.l.b16 %v1994
      %v2001 = vunpack.c.l.b16 %v1995
      %v2002 = vunpack.c.l.b16 %v1996
      %v2003 = vunpack.c.h.b16 %v1994
      %v2004 = vunpack.c.h.b16 %v1995
      %v2005 = vunpack.c.h.b16 %v1996
      %v2006 = vpack.c.b16 %v2001, %v2000
      %v2007 = vpack.c.b16 %v2002, %v2002
      %v2008 = vpack.c.b16 %v2004, %v2003
      %v2009 = vpack.c.b16 %v2005, %v2005
      %2010 = vrot.lane.b32.xlu0 %v2006, 15
      %v2011 = vpop.permute.xlu0 %2010
      %2012 = vrot.lane.b32.xlu0 %v2007, 15
      %v2013 = vpop.permute.xlu0 %2012
      %2014 = vrot.lane.b32.xlu0 %v2008, 15
      %v2015 = vpop.permute.xlu0 %2014
      %2016 = vrot.lane.b32.xlu0 %v2009, 15
      %v2017 = vpop.permute.xlu0 %2016
      %v2018 = vrot.slane %v2011, 4
      %v2019 = vrot.slane %v2013, 4
      %v2020 = vrot.slane %v2015, 4
      %v2021 = vrot.slane %v2017, 4
      %v2022 = vsel %vm465, %v2018, %v2019
      %v2023 = vsel %vm669, %v2011, %v2022
      %v2024 = vsel %vm465, %v2020, %v2021
      %v2025 = vsel %vm669, %v2015, %v2024
      %2028 = vst [vmem:[#allocation5 + $0x20] sm:$0xff] %v2023
      %2029 = vst [vmem:[#allocation5 + $0x28] sm:$0xff] %v2025
      %v2030 = vld [vmem:[#allocation4] sm:$0xff]
      %v2031 = vld [vmem:[#allocation4 + $0x8] sm:$0xff]
      %v2032 = vld [vmem:[#allocation4 + $0x10] sm:$0xff]
      %v2033 = vld [vmem:[#allocation4 + $0x20] sm:$0xff]
      %v2034 = vld [vmem:[#allocation4 + $0x28] sm:$0xff]
      %v2035 = vld [vmem:[#allocation4 + $0x30] sm:$0xff]
      %v2036 = vld [vmem:[%s8] ss:$4 sm:$0x3]
      %v2038 = vlaneseq
      %v2039 = vshrl.u32 %v2038, 7
      %v2040 = vsub.s32 0, %v2039
      %v2041 = vrot.slane %v2036, %v2040
      %v2042 = vlaneseq
      %v2043 = vshrl.u32 %v2042, 7
      %v2044 = vsub.s32 1, %v2043
      %v2045 = vrot.slane %v2036, %v2044
      %2046 = vrot.lane.b32.xlu0 %v2041, 127
      %v2047 = vpop.permute.xlu0 %2046
      %2048 = vrot.lane.b32.xlu0 %v2045, 127
      %v2049 = vpop.permute.xlu0 %2048
      %v2050 = vsel %vm711, %v2047, %v2049
      %v2054 = vmul.f32 %v2030, %v2047
      %v2055 = vmul.f32 %v2031, %v2050
      %v2056 = vmul.f32 %v2032, %v2049
      %v2057 = vmul.f32 %v2033, %v2047
      %v2058 = vmul.f32 %v2034, %v2050
      %v2059 = vmul.f32 %v2035, %v2049
      %v2060 = vpack.c.bf16 %v2057, %v2054
      %v2061 = vpack.c.bf16 %v2058, %v2055
      %v2062 = vpack.c.bf16 %v2059, %v2056
      %v2066 = vunpack.c.l.b16 %v2060
      %v2067 = vunpack.c.l.b16 %v2061
      %v2068 = vunpack.c.l.b16 %v2062
      %v2069 = vunpack.c.h.b16 %v2060
      %v2070 = vunpack.c.h.b16 %v2061
      %v2071 = vunpack.c.h.b16 %v2062
      %v2072 = vpack.c.b16 %v2067, %v2066
      %v2073 = vpack.c.b16 %v2068, %v2068
      %v2074 = vpack.c.b16 %v2070, %v2069
      %v2075 = vpack.c.b16 %v2071, %v2071
      %2076 = vrot.lane.b32.xlu0 %v2072, 1
      %v2077 = vpop.permute.xlu0 %2076
      %2078 = vrot.lane.b32.xlu0 %v2073, 1
      %v2079 = vpop.permute.xlu0 %2078
      %2080 = vrot.lane.b32.xlu0 %v2074, 1
      %v2081 = vpop.permute.xlu0 %2080
      %2082 = vrot.lane.b32.xlu0 %v2075, 1
      %v2083 = vpop.permute.xlu0 %2082
      %v2084 = vrot.slane %v2077, 4
      %v2085 = vrot.slane %v2079, 4
      %v2086 = vrot.slane %v2081, 4
      %v2087 = vrot.slane %v2083, 4
      %v2088 = vsel %vm465, %v2084, %v2085
      %v2089 = vsel %vm785, %v2077, %v2088
      %v2090 = vsel %vm465, %v2086, %v2087
      %v2091 = vsel %vm785, %v2081, %v2090
      %2094 = vst [vmem:[#allocation5 + $0x30] sm:$0xff] %v2089
      %2095 = vst [vmem:[#allocation5 + $0x38] sm:$0xff] %v2091
      %v2096 = vld [vmem:[#allocation4 + $0x8] sm:$0xff]
      %v2097 = vld [vmem:[#allocation4 + $0x10] sm:$0xff]
      %v2098 = vld [vmem:[#allocation4 + $0x28] sm:$0xff]
      %v2099 = vld [vmem:[#allocation4 + $0x30] sm:$0xff]
      %v2100 = vpack.c.bf16 %v2098, %v2096
      %v2101 = vpack.c.bf16 %v2099, %v2097
      %v2104 = vunpack.c.l.b16 %v2100
      %v2105 = vunpack.c.l.b16 %v2101
      %v2106 = vunpack.c.h.b16 %v2100
      %v2107 = vunpack.c.h.b16 %v2101
      %v2108 = vpack.c.b16 %v2105, %v2104
      %v2109 = vpack.c.b16 %v2107, %v2106
      %2112 = vst [vmem:[#allocation5 + $0x40] sm:$0xff] %v2108
      %2113 = vst [vmem:[#allocation5 + $0x48] sm:$0xff] %v2109
      %v2114 = vld [vmem:[#allocation4 + $0x8] sm:$0xff]
      %v2115 = vld [vmem:[#allocation4 + $0x10] sm:$0xff]
      %v2116 = vld [vmem:[#allocation4 + $0x18] sm:$0xff]
      %v2117 = vld [vmem:[#allocation4 + $0x28] sm:$0xff]
      %v2118 = vld [vmem:[#allocation4 + $0x30] sm:$0xff]
      %v2119 = vld [vmem:[#allocation4 + $0x38] sm:$0xff]
      %v2120 = vld [vmem:[%s580] ss:$4 sm:$0x3]
      %v2122 = vlaneseq
      %v2123 = vshrl.u32 %v2122, 7
      %v2124 = vsub.s32 0, %v2123
      %v2125 = vrot.slane %v2120, %v2124
      %v2126 = vlaneseq
      %v2127 = vshrl.u32 %v2126, 7
      %v2128 = vsub.s32 1, %v2127
      %v2129 = vrot.slane %v2120, %v2128
      %2130 = vrot.lane.b32.xlu0 %v2125, 1
      %v2131 = vpop.permute.xlu0 %2130
      %2132 = vrot.lane.b32.xlu0 %v2129, 1
      %v2133 = vpop.permute.xlu0 %2132
      %v2134 = vsel %vm863, %v2131, %v2133
      %v2138 = vmul.f32 %v2114, %v2131
      %v2139 = vmul.f32 %v2115, %v2134
      %v2140 = vmul.f32 %v2116, %v2133
      %v2141 = vmul.f32 %v2117, %v2131
      %v2142 = vmul.f32 %v2118, %v2134
      %v2143 = vmul.f32 %v2119, %v2133
      %v2144 = vpack.c.bf16 %v2141, %v2138
      %v2145 = vpack.c.bf16 %v2142, %v2139
      %v2146 = vpack.c.bf16 %v2143, %v2140
      %v2150 = vunpack.c.l.b16 %v2144
      %v2151 = vunpack.c.l.b16 %v2145
      %v2152 = vunpack.c.l.b16 %v2146
      %v2153 = vunpack.c.h.b16 %v2144
      %v2154 = vunpack.c.h.b16 %v2145
      %v2155 = vunpack.c.h.b16 %v2146
      %v2156 = vpack.c.b16 %v2151, %v2150
      %v2157 = vpack.c.b16 %v2152, %v2152
      %v2158 = vpack.c.b16 %v2154, %v2153
      %v2159 = vpack.c.b16 %v2155, %v2155
      %2160 = vrot.lane.b32.xlu0 %v2156, 127
      %v2161 = vpop.permute.xlu0 %2160
      %2162 = vrot.lane.b32.xlu0 %v2157, 127
      %v2163 = vpop.permute.xlu0 %2162
      %2164 = vrot.lane.b32.xlu0 %v2158, 127
      %v2165 = vpop.permute.xlu0 %2164
      %2166 = vrot.lane.b32.xlu0 %v2159, 127
      %v2167 = vpop.permute.xlu0 %2166
      %v2168 = vrot.slane %v2161, 4
      %v2169 = vrot.slane %v2163, 4
      %v2170 = vrot.slane %v2165, 4
      %v2171 = vrot.slane %v2167, 4
      %v2172 = vsel %vm465, %v2168, %v2169
      %v2173 = vsel %vm937, %v2161, %v2172
      %v2174 = vsel %vm465, %v2170, %v2171
      %v2175 = vsel %vm937, %v2165, %v2174
      %2178 = vst [vmem:[#allocation5 + $0x50] sm:$0xff] %v2173
      %2179 = vst [vmem:[#allocation5 + $0x58] sm:$0xff] %v2175
      %v2180 = vld [vmem:[#allocation4 + $0x8] sm:$0xff]
      %v2181 = vld [vmem:[#allocation4 + $0x10] sm:$0xff]
      %v2182 = vld [vmem:[#allocation4 + $0x18] sm:$0xff]
      %v2183 = vld [vmem:[#allocation4 + $0x28] sm:$0xff]
      %v2184 = vld [vmem:[#allocation4 + $0x30] sm:$0xff]
      %v2185 = vld [vmem:[#allocation4 + $0x38] sm:$0xff]
      %v2186 = vld [vmem:[%s8] ss:$4 sm:$0x3]
      %v2188 = vlaneseq
      %v2189 = vshrl.u32 %v2188, 7
      %v2190 = vsub.s32 0, %v2189
      %v2191 = vrot.slane %v2186, %v2190
      %v2192 = vlaneseq
      %v2193 = vshrl.u32 %v2192, 7
      %v2194 = vsub.s32 1, %v2193
      %v2195 = vrot.slane %v2186, %v2194
      %2196 = vrot.lane.b32.xlu0 %v2191, 15
      %v2197 = vpop.permute.xlu0 %2196
      %2198 = vrot.lane.b32.xlu0 %v2195, 15
      %v2199 = vpop.permute.xlu0 %2198
      %v2200 = vsel %vm979, %v2197, %v2199
      %v2204 = vmul.f32 %v2180, %v2197
      %v2205 = vmul.f32 %v2181, %v2200
      %v2206 = vmul.f32 %v2182, %v2199
      %v2207 = vmul.f32 %v2183, %v2197
      %v2208 = vmul.f32 %v2184, %v2200
      %v2209 = vmul.f32 %v2185, %v2199
      %v2210 = vpack.c.bf16 %v2207, %v2204
      %v2211 = vpack.c.bf16 %v2208, %v2205
      %v2212 = vpack.c.bf16 %v2209, %v2206
      %v2216 = vunpack.c.l.b16 %v2210
      %v2217 = vunpack.c.l.b16 %v2211
      %v2218 = vunpack.c.l.b16 %v2212
      %v2219 = vunpack.c.h.b16 %v2210
      %v2220 = vunpack.c.h.b16 %v2211
      %v2221 = vunpack.c.h.b16 %v2212
      %v2222 = vpack.c.b16 %v2217, %v2216
      %v2223 = vpack.c.b16 %v2218, %v2218
      %v2224 = vpack.c.b16 %v2220, %v2219
      %v2225 = vpack.c.b16 %v2221, %v2221
      %2226 = vrot.lane.b32.xlu0 %v2222, 113
      %v2227 = vpop.permute.xlu0 %2226
      %2228 = vrot.lane.b32.xlu0 %v2223, 113
      %v2229 = vpop.permute.xlu0 %2228
      %2230 = vrot.lane.b32.xlu0 %v2224, 113
      %v2231 = vpop.permute.xlu0 %2230
      %2232 = vrot.lane.b32.xlu0 %v2225, 113
      %v2233 = vpop.permute.xlu0 %2232
      %v2234 = vrot.slane %v2227, 4
      %v2235 = vrot.slane %v2229, 4
      %v2236 = vrot.slane %v2231, 4
      %v2237 = vrot.slane %v2233, 4
      %v2238 = vsel %vm465, %v2234, %v2235
      %v2239 = vsel %vm1053, %v2227, %v2238
      %v2240 = vsel %vm465, %v2236, %v2237
      %v2241 = vsel %vm1053, %v2231, %v2240
      %2244 = vst [vmem:[#allocation5 + $0x60] sm:$0xff] %v2239
      %2245 = vst [vmem:[#allocation5 + $0x68] sm:$0xff] %v2241
      %v2246 = vld [vmem:[#allocation4 + $0x8] sm:$0xff]
      %v2247 = vld [vmem:[#allocation4 + $0x10] sm:$0xff]
      %v2248 = vld [vmem:[#allocation4 + $0x18] sm:$0xff]
      %v2249 = vld [vmem:[#allocation4 + $0x28] sm:$0xff]
      %v2250 = vld [vmem:[#allocation4 + $0x30] sm:$0xff]
      %v2251 = vld [vmem:[#allocation4 + $0x38] sm:$0xff]
      %v2252 = vpack.c.bf16 %v2249, %v2246
      %v2253 = vpack.c.bf16 %v2250, %v2247
      %v2254 = vpack.c.bf16 %v2251, %v2248
      %v2258 = vunpack.c.l.b16 %v2252
      %v2259 = vunpack.c.l.b16 %v2253
      %v2260 = vunpack.c.l.b16 %v2254
      %v2261 = vunpack.c.h.b16 %v2252
      %v2262 = vunpack.c.h.b16 %v2253
      %v2263 = vunpack.c.h.b16 %v2254
      %v2264 = vpack.c.b16 %v2259, %v2258
      %v2265 = vpack.c.b16 %v2260, %v2260
      %v2266 = vpack.c.b16 %v2262, %v2261
      %v2267 = vpack.c.b16 %v2263, %v2263
      %2268 = vrot.lane.b32.xlu0 %v2264, 112
      %v2269 = vpop.permute.xlu0 %2268
      %2270 = vrot.lane.b32.xlu0 %v2265, 112
      %v2271 = vpop.permute.xlu0 %2270
      %2272 = vrot.lane.b32.xlu0 %v2266, 112
      %v2273 = vpop.permute.xlu0 %2272
      %2274 = vrot.lane.b32.xlu0 %v2267, 112
      %v2275 = vpop.permute.xlu0 %2274
      %v2276 = vrot.slane %v2269, 4
      %v2277 = vrot.slane %v2271, 4
      %v2278 = vrot.slane %v2273, 4
      %v2279 = vrot.slane %v2275, 4
      %v2280 = vsel %vm465, %v2276, %v2277
      %v2281 = vsel %vm1138, %v2269, %v2280
      %v2282 = vsel %vm465, %v2278, %v2279
      %v2283 = vsel %vm1138, %v2273, %v2282
      %2286 = vst [vmem:[#allocation5 + $0x70] sm:$0xff] %v2281
      %2287 = vst [vmem:[#allocation5 + $0x78] sm:$0xff] %v2283
      %v2288 = vld [vmem:[#allocation4 + $0x8] sm:$0xff]
      %v2289 = vld [vmem:[#allocation4 + $0x10] sm:$0xff]
      %v2290 = vld [vmem:[#allocation4 + $0x18] sm:$0xff]
      %v2291 = vld [vmem:[#allocation4 + $0x28] sm:$0xff]
      %v2292 = vld [vmem:[#allocation4 + $0x30] sm:$0xff]
      %v2293 = vld [vmem:[#allocation4 + $0x38] sm:$0xff]
      %v2294 = vld [vmem:[%s580] ss:$4 sm:$0x3]
      %v2296 = vlaneseq
      %v2297 = vshrl.u32 %v2296, 7
      %v2298 = vsub.s32 0, %v2297
      %v2299 = vrot.slane %v2294, %v2298
      %v2300 = vlaneseq
      %v2301 = vshrl.u32 %v2300, 7
      %v2302 = vsub.s32 1, %v2301
      %v2303 = vrot.slane %v2294, %v2302
      %2304 = vrot.lane.b32.xlu0 %v2299, 17
      %v2305 = vpop.permute.xlu0 %2304
      %2306 = vrot.lane.b32.xlu0 %v2303, 17
      %v2307 = vpop.permute.xlu0 %2306
      %v2308 = vsel %vm1180, %v2305, %v2307
      %v2312 = vmul.f32 %v2288, %v2305
      %v2313 = vmul.f32 %v2289, %v2308
      %v2314 = vmul.f32 %v2290, %v2307
      %v2315 = vmul.f32 %v2291, %v2305
      %v2316 = vmul.f32 %v2292, %v2308
      %v2317 = vmul.f32 %v2293, %v2307
      %v2318 = vpack.c.bf16 %v2315, %v2312
      %v2319 = vpack.c.bf16 %v2316, %v2313
      %v2320 = vpack.c.bf16 %v2317, %v2314
      %v2324 = vunpack.c.l.b16 %v2318
      %v2325 = vunpack.c.l.b16 %v2319
      %v2326 = vunpack.c.l.b16 %v2320
      %v2327 = vunpack.c.h.b16 %v2318
      %v2328 = vunpack.c.h.b16 %v2319
      %v2329 = vunpack.c.h.b16 %v2320
      %v2330 = vpack.c.b16 %v2325, %v2324
      %v2331 = vpack.c.b16 %v2326, %v2326
      %v2332 = vpack.c.b16 %v2328, %v2327
      %v2333 = vpack.c.b16 %v2329, %v2329
      %2334 = vrot.lane.b32.xlu0 %v2330, 111
      %v2335 = vpop.permute.xlu0 %2334
      %2336 = vrot.lane.b32.xlu0 %v2331, 111
      %v2337 = vpop.permute.xlu0 %2336
      %2338 = vrot.lane.b32.xlu0 %v2332, 111
      %v2339 = vpop.permute.xlu0 %2338
      %2340 = vrot.lane.b32.xlu0 %v2333, 111
      %v2341 = vpop.permute.xlu0 %2340
      %v2342 = vrot.slane %v2335, 4
      %v2343 = vrot.slane %v2337, 4
      %v2344 = vrot.slane %v2339, 4
      %v2345 = vrot.slane %v2341, 4
      %v2346 = vsel %vm465, %v2342, %v2343
      %v2347 = vsel %vm1254, %v2335, %v2346
      %v2348 = vsel %vm465, %v2344, %v2345
      %v2349 = vsel %vm1254, %v2339, %v2348
      %2352 = vst [vmem:[#allocation5 + $0x80] sm:$0xff] %v2347
      %2353 = vst [vmem:[#allocation5 + $0x88] sm:$0xff] %v2349
      %v2354 = vld [vmem:[%s6] sm:$0xf]
      %v2355 = vld [vmem:[#allocation5] sm:$0xff]
      %v2356 = vld [vmem:[#allocation5 + $0x8] sm:$0xff]
      %v2357 = vld [vmem:[#allocation5 + $0x10] sm:$0xff]
      %v2358 = vld [vmem:[#allocation5 + $0x18] sm:$0xff]
      %v2359 = vld [vmem:[#allocation5 + $0x20] sm:$0xff]
      %v2360 = vld [vmem:[#allocation5 + $0x28] sm:$0xff]
      %v2361 = vld [vmem:[#allocation5 + $0x30] sm:$0xff]
      %v2362 = vld [vmem:[#allocation5 + $0x38] sm:$0xff]
      %v2363 = vld [vmem:[#allocation5 + $0x40] sm:$0xff]
      %v2364 = vld [vmem:[#allocation5 + $0x48] sm:$0xff]
      %v2365 = vld [vmem:[#allocation5 + $0x50] sm:$0xff]
      %v2366 = vld [vmem:[#allocation5 + $0x58] sm:$0xff]
      %v2367 = vld [vmem:[#allocation5 + $0x60] sm:$0xff]
      %v2368 = vld [vmem:[#allocation5 + $0x68] sm:$0xff]
      %v2369 = vld [vmem:[#allocation5 + $0x70] sm:$0xff]
      %v2370 = vld [vmem:[#allocation5 + $0x78] sm:$0xff]
      %v2371 = vld [vmem:[#allocation5 + $0x80] sm:$0xff]
      %v2372 = vld [vmem:[#allocation5 + $0x88] sm:$0xff]
      %v2373 = vld [vmem:[%s7] sm:$0xf]
      %2375 = vset.pattern.permute.xlu0 0
      %2376 = vperm.xlu0 %2375, %v2373
      %v2377 = vpop.permute.xlu0 %2376
      %v2381 = vunpack.c.l.s4 1983009808
      %v2382 = vunpack.c.0.s8 %v2381
      %v2383 = vlaneseq
      %v2384 = vshrl.u32 %v2383, 7
      %v2385 = vsub.s32 %v2382, %v2384
      %v2386 = vrot.slane %v2354, %v2385
      %v2387 = vcombine.high %v2386, %v2386
      %v2407 = vunpack.c.l.b16 %v2355
      %v2408 = vunpack.c.h.b16 %v2355
      %v2409 = vunpack.c.l.b16 %v2356
      %v2410 = vunpack.c.h.b16 %v2356
      %v2411 = vunpack.c.l.b16 %v2357
      %v2412 = vunpack.c.h.b16 %v2357
      %v2413 = vunpack.c.l.b16 %v2358
      %v2414 = vunpack.c.h.b16 %v2358
      %v2415 = vunpack.c.l.b16 %v2359
      %v2416 = vunpack.c.h.b16 %v2359
      %v2417 = vunpack.c.l.b16 %v2360
      %v2418 = vunpack.c.h.b16 %v2360
      %v2419 = vunpack.c.l.b16 %v2361
      %v2420 = vunpack.c.h.b16 %v2361
      %v2421 = vunpack.c.l.b16 %v2362
      %v2422 = vunpack.c.h.b16 %v2362
      %v2423 = vunpack.c.l.b16 %v2363
      %v2424 = vunpack.c.h.b16 %v2363
      %v2425 = vunpack.c.l.b16 %v2364
      %v2426 = vunpack.c.h.b16 %v2364
      %v2427 = vunpack.c.l.b16 %v2365
      %v2428 = vunpack.c.h.b16 %v2365
      %v2429 = vunpack.c.l.b16 %v2366
      %v2430 = vunpack.c.h.b16 %v2366
      %v2431 = vunpack.c.l.b16 %v2367
      %v2432 = vunpack.c.h.b16 %v2367
      %v2433 = vunpack.c.l.b16 %v2368
      %v2434 = vunpack.c.h.b16 %v2368
      %v2435 = vunpack.c.l.b16 %v2369
      %v2436 = vunpack.c.h.b16 %v2369
      %v2437 = vunpack.c.l.b16 %v2370
      %v2438 = vunpack.c.h.b16 %v2370
      %v2439 = vunpack.c.l.b16 %v2371
      %v2440 = vunpack.c.h.b16 %v2371
      %v2441 = vunpack.c.l.b16 %v2372
      %v2442 = vunpack.c.h.b16 %v2372
      %v2443 = vpack.c.b16 %v2409, %v2407
      %v2444 = vpack.c.b16 %v2410, %v2408
      %v2445 = vpack.c.b16 %v2413, %v2411
      %v2446 = vpack.c.b16 %v2414, %v2412
      %v2447 = vpack.c.b16 %v2417, %v2415
      %v2448 = vpack.c.b16 %v2418, %v2416
      %v2449 = vpack.c.b16 %v2421, %v2419
      %v2450 = vpack.c.b16 %v2422, %v2420
      %v2451 = vpack.c.b16 %v2425, %v2423
      %v2452 = vpack.c.b16 %v2426, %v2424
      %v2453 = vpack.c.b16 %v2429, %v2427
      %v2454 = vpack.c.b16 %v2430, %v2428
      %v2455 = vpack.c.b16 %v2433, %v2431
      %v2456 = vpack.c.b16 %v2434, %v2432
      %v2457 = vpack.c.b16 %v2437, %v2435
      %v2458 = vpack.c.b16 %v2438, %v2436
      %v2459 = vpack.c.b16 %v2441, %v2439
      %v2460 = vpack.c.b16 %v2442, %v2440
      %v2480 = vsel %vm1625, %v2387, 0
      %2482 = vmatprep.subr.bf16.mxu0 %v2458
      %2483 = vmatpush1.bf16.msra.mxu0 %v2457
      %2484 = vmatprep.subr.bf16.mxu0 %v2456
      %2485 = vmatpush1.bf16.msra.mxu0 %v2455
      %2486 = vmatprep.subr.bf16.mxu0 %v2454
      %2487 = vmatpush1.bf16.msra.mxu0 %v2453
      %2488 = vmatprep.subr.bf16.mxu0 %v2452
      %2489 = vmatpush1.bf16.msra.mxu0 %v2451
      %2490 = vmatprep.subr.bf16.mxu0 %v2450
      %2491 = vmatpush1.bf16.msra.mxu0 %v2449
      %2492 = vmatprep.subr.bf16.mxu0 %v2448
      %2493 = vmatpush1.bf16.msra.mxu0 %v2447
      %2494 = vmatprep.subr.bf16.mxu0 %v2446
      %2495 = vmatpush1.bf16.msra.mxu0 %v2445
      %2496 = vmatprep.subr.bf16.mxu0 %v2444
      %2497 = vmatpush1.bf16.msra.mxu0 %v2443
      %2498 = vmatprep.subr.bf16.mxu0 0
      %2499 = vmatpush2.bf16.msra.mxu0 0
      %2500 = vmatprep.subr.bf16.mxu0 0
      %2501 = vmatpush2.bf16.msra.mxu0 0
      %2502 = vmatprep.subr.bf16.mxu0 0
      %2503 = vmatpush2.bf16.msra.mxu0 0
      %2504 = vmatprep.subr.bf16.mxu0 0
      %2505 = vmatpush2.bf16.msra.mxu0 0
      %2506 = vmatprep.subr.bf16.mxu0 0
      %2507 = vmatpush2.bf16.msra.mxu0 0
      %2508 = vmatprep.subr.bf16.mxu0 0
      %2509 = vmatpush2.bf16.msra.mxu0 0
      %2510 = vmatprep.subr.bf16.mxu0 0
      %2511 = vmatpush2.bf16.msra.mxu0 0
      %2512 = vmatprep.subr.bf16.mxu0 %v2460
      %2513 = vmatpush2.bf16.msra.mxu0 %v2459
      %2514 = vmatprep.mubr.bf16.mxu0 %v2480
      %2515 = vmatmul.mubr.bf16.gmra.mxu0 %v2386
      %v2516 = vpop.f32.mrf.mxu0
      %v2517 = vadd.f32 %v2377, %v2516
      %v2518 = vpop.f32.mrf.mxu0
      %v2519 = vadd.f32 %v2377, %v2518
      %v2520 = vpop.f32.mrf.mxu0
      %v2521 = vpop.f32.mrf.mxu0
      %2522 = vdwg.mxu0
      %v2525 = vcombine.low %v2517, %v2519
      %2527 = vst [vmem:[%s332] sm:$0xff] %v2525
      %p2528 = scmp.lt.s32.totalorder %s20, 1
      %s2529 = scalar_select %p2528, %s20, 1
      %s2530 = smul.addr %s2529, 2
      %s2531 = smul.addr %s2530, 4
      %s2532 = scalar_lea.vmem %s9, %s2531
      // Predicated region
      $region57: #{unet_output_block.1} parent=55 // pred_check
        %p2533 = pneg %p232
      $region58: #{unet_output_block.1} parent=55 // pred_check_branch
        %2535 = sbr.rel (%p2533) target = $region60
      $region59: #{unet_output_block.1} parent=55 // pred_region
        _
      $region60: #{unet_output_block.1} parent=55 // pred_fallthru
        _
    $region56: #{unet_output_block.1} parent=5 // pred_fallthru
      _
    %p2536 = scmp.le.s32.totalorder 2, %s15
    // Predicated region
    $region61: #{unet_output_block.1} parent=5 // pred_check
      %p2537 = pneg %p2536
    $region62: #{unet_output_block.1} parent=5 // pred_check_branch
      %2539 = sbr.rel (%p2537) target = $region64
    $region63: #{unet_output_block.1} parent=5 // pred_region
      %s2540 = ssub.s32 %s15, 2
      // Predicated region
      $region65: #{unet_output_block.1} parent=63 // pred_check
        %p2541 = pneg %p238
      $region66: #{unet_output_block.1} parent=63 // pred_check_branch
        %2543 = sbr.rel (%p2541) target = $region68
      $region67: #{unet_output_block.1} parent=63 // pred_region
        %p2544 = scmp.lt.s32.totalorder %s21, 1
        %s2545 = scalar_select %p2544, %s21, 1
        %s2546 = smul.addr %s2545, 2
        %s2547 = smul.addr %s2546, 4
        %s2548 = scalar_lea.vmem %s9, %s2547
      $region68: #{unet_output_block.1} parent=63 // pred_fallthru
        _
    $region64: #{unet_output_block.1} parent=5 // pred_fallthru
      _
  $region6: #{unet_output_block.1} parent=0 // loop_footer
    %s19 = sadd.s32 1, %s15
  $region7: #{unet_output_block.1} parent=0 // loop_footer_branch
    %14 = sbr.rel target = $region3
  $region8: #{unet_output_block.1} parent=0 // loop_exit
    _

</llo_original>
